<compile_context>
chip_gen: v6e
topology: v6e:2x2x1
jax: 0.10.0
libtpu: 0.0.40
codegen_flags: <defaults>
</compile_context>

<pallas_src>
import jax
import jax.numpy as jnp
from jax.experimental import pallas as pl
from jax.experimental.pallas import tpu as pltpu


def _critic_kernel(inp_ref, w_ref, b2_ref, o_ref):
    # inp_ref: [3, TB]  rows are (t, x0, x1); batch lives on lanes.
    # w_ref:   [H, 5]   cols 0..2 = W1^T, col 3 = b1, col 4 = w2; H on sublanes.
    # b2_ref:  (1,)     SMEM scalar bias of the second layer.
    # o_ref:   [1, TB]  lane-dense output row (batch on lanes).
    inp = inp_ref[...]                                   # [3, TB]
    w = w_ref[...]                                       # [H, 5]

    # Layer 1 on the VPU: hT = W1^T @ [t|x]^T + b1, K=3 unrolled as broadcast FMAs.
    h = (w[:, 0:1] * inp[0:1, :]
         + w[:, 1:2] * inp[1:2, :]
         + w[:, 2:3] * inp[2:3, :]
         + w[:, 3:4])                                    # [H, TB]
    h = jnp.maximum(h, 0.0)                              # ReLU

    # Layer 2: reduce over H (sublane axis) -> lane-dense [1, TB] result, no relayout.
    out = jnp.sum(h * w[:, 4:5], axis=0, keepdims=True) + b2_ref[0]
    o_ref[...] = out.astype(o_ref.dtype)


def _round_up(x, m):
    return ((x + m - 1) // m) * m


def critic_policy_forward(t, x, w1, b1, w2, b2, *, max_block_b=1024):
    """t: [B,1], x: [B,2], w1: [3,H], b1: [1,H] or [H], w2: [H,1] or [H], b2: scalar-like.

    Returns the same as CriticPolicy.forward(t, x): shape (B,), 0-d if B == 1.
    """
    # TODO(synk): the unbatched scalar-t branch of the PyTorch forward
    # (torch.cat([tensor([t]), x])) is not implemented; pass t as a [B, 1] array.
    B = t.shape[0]
    H = w1.shape[1]

    t = t.astype(jnp.float32)
    x = x.astype(jnp.float32)

    # Single transposed activation slab [3, B]: rows (t, x0, x1), batch on lanes.
    inp = jnp.concatenate([t, x], axis=1).T              # [3, B]

    # One resident weight slab [H, 5]: W1^T | b1 | w2  (H on sublanes).
    w_slab = jnp.concatenate(
        [w1.astype(jnp.float32).T,                       # [H, 3]
         jnp.reshape(b1, (H, 1)).astype(jnp.float32),    # [H, 1]
         jnp.reshape(w2, (H, 1)).astype(jnp.float32)],   # [H, 1]
        axis=1)                                          # [H, 5]
    b2s = jnp.reshape(b2, (1,)).astype(jnp.float32)      # 1-D SMEM scalar

    # Batch tile selection:
    #  - small B: one tile (rounded to a sublane multiple of 8).
    #  - larger B: 128-multiple tiles (unmasked lane-dense stores), at least two
    #    tiles so both v7x TCs get work, capped at max_block_b to amortize the
    #    per-grid-step overhead on single-TC v5e/v6e.
    if B <= 128:
        tb = _round_up(max(B, 1), 8)
    else:
        tb = min(_round_up(max_block_b, 128), _round_up(pl.cdiv(B, 2), 128))
    b_pad = _round_up(B, tb)
    if b_pad != B:
        inp = jnp.pad(inp, ((0, 0), (0, b_pad - B)))
    num_tiles = b_pad // tb

    out = pl.pallas_call(
        _critic_kernel,
        out_shape=jax.ShapeDtypeStruct((1, b_pad), jnp.float32),
        grid=(num_tiles,),
        in_specs=[
            pl.BlockSpec((3, tb), lambda i: (0, i)),             # activations (batch on lanes)
            pl.BlockSpec((H, 5), lambda i: (0, 0)),              # resident weight slab
            pl.BlockSpec(memory_space=pltpu.MemorySpace.SMEM),   # b2 scalar
        ],
        out_specs=pl.BlockSpec((1, tb), lambda i: (0, i)),       # lane-dense output row
        compiler_params=pltpu.CompilerParams(
            dimension_semantics=("parallel",),                   # shard tiles across TCs (v7x)
            vmem_limit_bytes=32 * 1024 * 1024,                   # headroom for [H,TB] temporaries
        ),
    )(inp, w_slab, b2s)

    return jnp.squeeze(out[0, :B])   # matches torch .squeeze()


def init_params(key, hidden_dim):
    """Deterministic init mimicking nn.Linear default (U[-1/sqrt(fan_in), +])."""
    k1, k2, k3, k4 = jax.random.split(key, 4)
    lim1 = 1.0 / jnp.sqrt(3.0)
    lim2 = 1.0 / jnp.sqrt(float(hidden_dim))
    w1 = jax.random.uniform(k1, (3, hidden_dim), jnp.float32, -lim1, lim1)
    b1 = jax.random.uniform(k2, (1, hidden_dim), jnp.float32, -lim1, lim1)
    w2 = jax.random.uniform(k3, (hidden_dim, 1), jnp.float32, -lim2, lim2)
    b2 = jax.random.uniform(k4, (1, 1), jnp.float32, -lim2, lim2)
    return w1, b1, w2, b2


def _reference(t, x, w1, b1, w2, b2):
    inp = jnp.concatenate([t, x], axis=1)
    h = jnp.maximum(inp @ w1 + jnp.reshape(b1, (1, -1)), 0.0)
    return jnp.squeeze(h @ jnp.reshape(w2, (-1, 1)) + jnp.reshape(b2, (1, 1)))


if __name__ == "__main__":
    hidden_dim = 512   # CriticPolicy module default
    key = jax.random.PRNGKey(0)
    kp, kt, kx, kt2, kx2 = jax.random.split(key, 5)
    w1, b1, w2, b2 = init_params(kp, hidden_dim)

    # Small single-tile batch.
    B1 = 8
    t1 = jax.random.uniform(kt, (B1, 1), jnp.float32)     # time input
    x1 = jax.random.normal(kx, (B1, 2), jnp.float32)      # state input
    v1 = jax.block_until_ready(critic_policy_forward(t1, x1, w1, b1, w2, b2))
    r1 = _reference(t1, x1, w1, b1, w2, b2)
    assert v1.shape == (B1,), v1.shape
    assert jnp.allclose(v1, r1, atol=2e-4, rtol=1e-4), float(jnp.max(jnp.abs(v1 - r1)))

    # Larger batch exercising padding + a multi-tile "parallel" grid.
    B2 = 300
    t2 = jax.random.uniform(kt2, (B2, 1), jnp.float32)
    x2 = jax.random.normal(kx2, (B2, 2), jnp.float32)
    v2 = jax.block_until_ready(critic_policy_forward(t2, x2, w1, b1, w2, b2))
    r2 = _reference(t2, x2, w1, b1, w2, b2)
    assert v2.shape == (B2,), v2.shape
    assert jnp.allclose(v2, r2, atol=2e-4, rtol=1e-4), float(jnp.max(jnp.abs(v2 - r2)))

    print("KERNEL_OK")
</pallas_src>

<mosaic_0001>
module attributes {stable_mosaic.version = 11 : i64} {
  func.func @_critic_kernel(%arg0: i32, %arg1: memref<3x8xf32, #tpu.memory_space<vmem>>, %arg2: memref<512x5xf32, #tpu.memory_space<vmem>>, %arg3: memref<1xf32, #tpu.memory_space<smem>>, %arg4: memref<1x8xf32, #tpu.memory_space<vmem>>) attributes {dimension_semantics = [#tpu.dimension_semantics<parallel>], iteration_bounds = array<i64: 1>, scalar_prefetch = 0 : i64, scratch_operands = 0 : i64, tpu.core_type = #tpu.core_type<tc>, window_params = [{transform_indices = @transform_0, window_bounds = array<i64: 3, 8>}, {pipeline_mode = #tpu.pipeline_mode<synchronous>, transform_indices = @transform_1, window_bounds = array<i64: 512, 5>}, {transform_indices = @transform_2, window_bounds = array<i64: 1>}, {transform_indices = @transform_3, window_bounds = array<i64: 1, 8>}]} {
    %c0 = arith.constant 0 : index
    %c0_0 = arith.constant 0 : index
    %0 = vector.load %arg1[%c0, %c0_0] : memref<3x8xf32, #tpu.memory_space<vmem>>, vector<3x8xf32>
    %c0_1 = arith.constant 0 : index
    %c0_2 = arith.constant 0 : index
    %1 = vector.load %arg2[%c0_1, %c0_2] : memref<512x5xf32, #tpu.memory_space<vmem>>, vector<512x5xf32>
    %2 = vector.extract_strided_slice %1 {offsets = [0, 0], sizes = [512, 1], strides = [1, 1]} : vector<512x5xf32> to vector<512x1xf32>
    %3 = vector.extract_strided_slice %0 {offsets = [0, 0], sizes = [1, 8], strides = [1, 1]} : vector<3x8xf32> to vector<1x8xf32>
    %4 = vector.broadcast %2 : vector<512x1xf32> to vector<512x8xf32>
    %5 = vector.broadcast %3 : vector<1x8xf32> to vector<512x8xf32>
    %6 = arith.mulf %4, %5 : vector<512x8xf32>
    %7 = vector.extract_strided_slice %1 {offsets = [0, 1], sizes = [512, 1], strides = [1, 1]} : vector<512x5xf32> to vector<512x1xf32>
    %8 = vector.extract_strided_slice %0 {offsets = [1, 0], sizes = [1, 8], strides = [1, 1]} : vector<3x8xf32> to vector<1x8xf32>
    %9 = vector.broadcast %7 : vector<512x1xf32> to vector<512x8xf32>
    %10 = vector.broadcast %8 : vector<1x8xf32> to vector<512x8xf32>
    %11 = arith.mulf %9, %10 : vector<512x8xf32>
    %12 = arith.addf %6, %11 : vector<512x8xf32>
    %13 = vector.extract_strided_slice %1 {offsets = [0, 2], sizes = [512, 1], strides = [1, 1]} : vector<512x5xf32> to vector<512x1xf32>
    %14 = vector.extract_strided_slice %0 {offsets = [2, 0], sizes = [1, 8], strides = [1, 1]} : vector<3x8xf32> to vector<1x8xf32>
    %15 = vector.broadcast %13 : vector<512x1xf32> to vector<512x8xf32>
    %16 = vector.broadcast %14 : vector<1x8xf32> to vector<512x8xf32>
    %17 = arith.mulf %15, %16 : vector<512x8xf32>
    %18 = arith.addf %12, %17 : vector<512x8xf32>
    %19 = vector.extract_strided_slice %1 {offsets = [0, 3], sizes = [512, 1], strides = [1, 1]} : vector<512x5xf32> to vector<512x1xf32>
    %20 = vector.broadcast %19 : vector<512x1xf32> to vector<512x8xf32>
    %21 = arith.addf %18, %20 : vector<512x8xf32>
    %cst = arith.constant 0.000000e+00 : f32
    %22 = vector.broadcast %cst : f32 to vector<512x8xf32>
    %23 = arith.maximumf %21, %22 : vector<512x8xf32>
    %24 = vector.extract_strided_slice %1 {offsets = [0, 4], sizes = [512, 1], strides = [1, 1]} : vector<512x5xf32> to vector<512x1xf32>
    %25 = vector.broadcast %24 : vector<512x1xf32> to vector<512x8xf32>
    %26 = arith.mulf %23, %25 : vector<512x8xf32>
    %cst_3 = arith.constant dense<0.000000e+00> : vector<8xf32>
    %27 = vector.multi_reduction <add>, %26, %cst_3 [0] : vector<512x8xf32> to vector<8xf32>
    %28 = vector.shape_cast %27 : vector<8xf32> to vector<1x8xf32>
    %c0_4 = arith.constant 0 : index
    %29 = memref.load %arg3[%c0_4] : memref<1xf32, #tpu.memory_space<smem>>
    %30 = vector.broadcast %29 : f32 to vector<1x8xf32>
    %31 = arith.addf %28, %30 : vector<1x8xf32>
    %c0_5 = arith.constant 0 : index
    %c0_6 = arith.constant 0 : index
    %32 = vector.load %arg4[%c0_5, %c0_6] : memref<1x8xf32, #tpu.memory_space<vmem>>, vector<1x8xf32>
    tpu.vector_store %arg4[%c0_5, %c0_6], %31 {strides = array<i32>} : memref<1x8xf32, #tpu.memory_space<vmem>>, vector<1x8xf32>,
    return
  }
  func.func @transform_0(%arg0: i32) -> (i32, i32) {
    %c0_i32 = arith.constant 0 : i32
    %c0_i32_0 = arith.constant 0 : i32
    return %c0_i32, %arg0 : i32, i32
  }
  func.func @transform_1(%arg0: i32) -> (i32, i32) {
    %c0_i32 = arith.constant 0 : i32
    %c0_i32_0 = arith.constant 0 : i32
    %c0_i32_1 = arith.constant 0 : i32
    return %c0_i32, %c0_i32_0 : i32, i32
  }
  func.func @transform_2(%arg0: i32) -> i32 {
    %c0_i32 = arith.constant 0 : i32
    %c0_i32_0 = arith.constant 0 : i32
    return %c0_i32 : i32
  }
  func.func @transform_3(%arg0: i32) -> (i32, i32) {
    %c0_i32 = arith.constant 0 : i32
    %c0_i32_0 = arith.constant 0 : i32
    return %c0_i32, %arg0 : i32, i32
  }
}

</mosaic_0001>

<llo_original>
// kernel: tpu_custom_call.1
$region0: #{tpu_custom_call.1}
  #allocation0 [shape = 'u32[]', space=smem, size = 0x4, offset = 0x4, fixed_abs, tag = 'smem constant byte address 0x4 - core index']
  #allocation1 [shape = 'u32[144,128]{1,0:T(1,128)}', space=vmem, size = 0x12000, scoped, tag = 'internal scratch']
  #allocation2 [shape = 'f32[1]{0:T(128)S(6)}', space=smem, size = 0x200, scoped, tag = 'scoped memory for tpu_custom_call.1']
  %s0 = inlined_call_operand.vmem [shape: f32[3,8], index: 0, kind: input, shape index: {}]
  %s1 = inlined_call_operand.vmem [shape: f32[512,5], index: 1, kind: input, shape index: {}]
  %s2 = inlined_call_operand.<no memory space> [shape: f32[1], index: 2, kind: input, shape index: {}]
  %s3 = inlined_call_operand.hbm [shape: f32[1,8], index: 3, kind: output, shape index: {}]
  %s4 = sld [smem:[#allocation0]]
  $region22: #{tpu_custom_call.1} parent=0
    _
  %s6 = ssub.s32 1, %s4
  %s7 = scalar_select 0, %s6, %s4
  %8 = sst [smem:[#allocation2]] %s2
  $region1: #{tpu_custom_call.1} parent=0
    #allocation3 [shape = 'u8[512]{0}', space=vmem, size = 0x400, scoped, tag = 'output window, operand 0, single buffered']
    #allocation4 [shape = 's32[1]{0}', space=sflag, size = 0x4, scoped, tag = 'scoped memory for tpu_custom_call.1']
    %9 = vsyncpa [#allocation4], 0
    // Predicated region
    $region2: #{tpu_custom_call.1} parent=1 // pred_check
      _
    $region3: #{tpu_custom_call.1} parent=1 // pred_check_branch
      %11 = sbr.rel (0) target = $region5
    $region4: #{tpu_custom_call.1} parent=1 // pred_region
      _
    $region5: #{tpu_custom_call.1} parent=1 // pred_fallthru
      _
    // Predicated region
    $region6: #{tpu_custom_call.1} parent=1 // pred_check
      _
    $region7: #{tpu_custom_call.1} parent=1 // pred_check_branch
      %13 = sbr.rel (0) target = $region9
    $region8: #{tpu_custom_call.1} parent=1 // pred_region
      _
    $region9: #{tpu_custom_call.1} parent=1 // pred_fallthru
      _
    // Predicated region
    $region10: #{tpu_custom_call.1} parent=1 // pred_check
      _
    $region11: #{tpu_custom_call.1} parent=1 // pred_check_branch
      %15 = sbr.rel (0) target = $region13
    $region12: #{tpu_custom_call.1} parent=1 // pred_region
      _
    $region13: #{tpu_custom_call.1} parent=1 // pred_fallthru
      _
    %v16 = vld [vmem:[%s0] sm:$0x7]
    %v17 = vld [vmem:[%s1] sm:$0xff]
    %v18 = vld [vmem:[%s1 + $0x8] sm:$0xff]
    %v19 = vld [vmem:[%s1 + $0x10] sm:$0xff]
    %v20 = vld [vmem:[%s1 + $0x18] sm:$0xff]
    %v21 = vld [vmem:[%s1 + $0x20] sm:$0xff]
    %v22 = vld [vmem:[%s1 + $0x28] sm:$0xff]
    %v23 = vld [vmem:[%s1 + $0x30] sm:$0xff]
    %v24 = vld [vmem:[%s1 + $0x38] sm:$0xff]
    %v25 = vld [vmem:[%s1 + $0x40] sm:$0xff]
    %v26 = vld [vmem:[%s1 + $0x48] sm:$0xff]
    %v27 = vld [vmem:[%s1 + $0x50] sm:$0xff]
    %v28 = vld [vmem:[%s1 + $0x58] sm:$0xff]
    %v29 = vld [vmem:[%s1 + $0x60] sm:$0xff]
    %v30 = vld [vmem:[%s1 + $0x68] sm:$0xff]
    %v31 = vld [vmem:[%s1 + $0x70] sm:$0xff]
    %v32 = vld [vmem:[%s1 + $0x78] sm:$0xff]
    %v33 = vld [vmem:[%s1 + $0x80] sm:$0xff]
    %v34 = vld [vmem:[%s1 + $0x88] sm:$0xff]
    %v35 = vld [vmem:[%s1 + $0x90] sm:$0xff]
    %v36 = vld [vmem:[%s1 + $0x98] sm:$0xff]
    %v37 = vld [vmem:[%s1 + $0xa0] sm:$0xff]
    %v38 = vld [vmem:[%s1 + $0xa8] sm:$0xff]
    %v39 = vld [vmem:[%s1 + $0xb0] sm:$0xff]
    %v40 = vld [vmem:[%s1 + $0xb8] sm:$0xff]
    %v41 = vld [vmem:[%s1 + $0xc0] sm:$0xff]
    %v42 = vld [vmem:[%s1 + $0xc8] sm:$0xff]
    %v43 = vld [vmem:[%s1 + $0xd0] sm:$0xff]
    %v44 = vld [vmem:[%s1 + $0xd8] sm:$0xff]
    %v45 = vld [vmem:[%s1 + $0xe0] sm:$0xff]
    %v46 = vld [vmem:[%s1 + $0xe8] sm:$0xff]
    %v47 = vld [vmem:[%s1 + $0xf0] sm:$0xff]
    %v48 = vld [vmem:[%s1 + $0xf8] sm:$0xff]
    %v49 = vld [vmem:[%s1 + $0x100] sm:$0xff]
    %v50 = vld [vmem:[%s1 + $0x108] sm:$0xff]
    %v51 = vld [vmem:[%s1 + $0x110] sm:$0xff]
    %v52 = vld [vmem:[%s1 + $0x118] sm:$0xff]
    %v53 = vld [vmem:[%s1 + $0x120] sm:$0xff]
    %v54 = vld [vmem:[%s1 + $0x128] sm:$0xff]
    %v55 = vld [vmem:[%s1 + $0x130] sm:$0xff]
    %v56 = vld [vmem:[%s1 + $0x138] sm:$0xff]
    %v57 = vld [vmem:[%s1 + $0x140] sm:$0xff]
    %v58 = vld [vmem:[%s1 + $0x148] sm:$0xff]
    %v59 = vld [vmem:[%s1 + $0x150] sm:$0xff]
    %v60 = vld [vmem:[%s1 + $0x158] sm:$0xff]
    %v61 = vld [vmem:[%s1 + $0x160] sm:$0xff]
    %v62 = vld [vmem:[%s1 + $0x168] sm:$0xff]
    %v63 = vld [vmem:[%s1 + $0x170] sm:$0xff]
    %v64 = vld [vmem:[%s1 + $0x178] sm:$0xff]
    %v65 = vld [vmem:[%s1 + $0x180] sm:$0xff]
    %v66 = vld [vmem:[%s1 + $0x188] sm:$0xff]
    %v67 = vld [vmem:[%s1 + $0x190] sm:$0xff]
    %v68 = vld [vmem:[%s1 + $0x198] sm:$0xff]
    %v69 = vld [vmem:[%s1 + $0x1a0] sm:$0xff]
    %v70 = vld [vmem:[%s1 + $0x1a8] sm:$0xff]
    %v71 = vld [vmem:[%s1 + $0x1b0] sm:$0xff]
    %v72 = vld [vmem:[%s1 + $0x1b8] sm:$0xff]
    %v73 = vld [vmem:[%s1 + $0x1c0] sm:$0xff]
    %v74 = vld [vmem:[%s1 + $0x1c8] sm:$0xff]
    %v75 = vld [vmem:[%s1 + $0x1d0] sm:$0xff]
    %v76 = vld [vmem:[%s1 + $0x1d8] sm:$0xff]
    %v77 = vld [vmem:[%s1 + $0x1e0] sm:$0xff]
    %v78 = vld [vmem:[%s1 + $0x1e8] sm:$0xff]
    %v79 = vld [vmem:[%s1 + $0x1f0] sm:$0xff]
    %v80 = vld [vmem:[%s1 + $0x1f8] sm:$0xff]
    %82 = vset.pattern.permute.xlu0 0
    %83 = vperm.xlu0 %82, %v17
    %v84 = vpop.permute.xlu0 %83
    %87 = vset.pattern.permute.xlu0 0
    %88 = vperm.xlu0 %87, %v18
    %v89 = vpop.permute.xlu0 %88
    %92 = vset.pattern.permute.xlu0 0
    %93 = vperm.xlu0 %92, %v19
    %v94 = vpop.permute.xlu0 %93
    %97 = vset.pattern.permute.xlu0 0
    %98 = vperm.xlu0 %97, %v20
    %v99 = vpop.permute.xlu0 %98
    %102 = vset.pattern.permute.xlu0 0
    %103 = vperm.xlu0 %102, %v21
    %v104 = vpop.permute.xlu0 %103
    %107 = vset.pattern.permute.xlu0 0
    %108 = vperm.xlu0 %107, %v22
    %v109 = vpop.permute.xlu0 %108
    %112 = vset.pattern.permute.xlu0 0
    %113 = vperm.xlu0 %112, %v23
    %v114 = vpop.permute.xlu0 %113
    %117 = vset.pattern.permute.xlu0 0
    %118 = vperm.xlu0 %117, %v24
    %v119 = vpop.permute.xlu0 %118
    %122 = vset.pattern.permute.xlu0 0
    %123 = vperm.xlu0 %122, %v25
    %v124 = vpop.permute.xlu0 %123
    %127 = vset.pattern.permute.xlu0 0
    %128 = vperm.xlu0 %127, %v26
    %v129 = vpop.permute.xlu0 %128
    %132 = vset.pattern.permute.xlu0 0
    %133 = vperm.xlu0 %132, %v27
    %v134 = vpop.permute.xlu0 %133
    %137 = vset.pattern.permute.xlu0 0
    %138 = vperm.xlu0 %137, %v28
    %v139 = vpop.permute.xlu0 %138
    %142 = vset.pattern.permute.xlu0 0
    %143 = vperm.xlu0 %142, %v29
    %v144 = vpop.permute.xlu0 %143
    %147 = vset.pattern.permute.xlu0 0
    %148 = vperm.xlu0 %147, %v30
    %v149 = vpop.permute.xlu0 %148
    %152 = vset.pattern.permute.xlu0 0
    %153 = vperm.xlu0 %152, %v31
    %v154 = vpop.permute.xlu0 %153
    %157 = vset.pattern.permute.xlu0 0
    %158 = vperm.xlu0 %157, %v32
    %v159 = vpop.permute.xlu0 %158
    %162 = vset.pattern.permute.xlu0 0
    %163 = vperm.xlu0 %162, %v33
    %v164 = vpop.permute.xlu0 %163
    %167 = vset.pattern.permute.xlu0 0
    %168 = vperm.xlu0 %167, %v34
    %v169 = vpop.permute.xlu0 %168
    %172 = vset.pattern.permute.xlu0 0
    %173 = vperm.xlu0 %172, %v35
    %v174 = vpop.permute.xlu0 %173
    %177 = vset.pattern.permute.xlu0 0
    %178 = vperm.xlu0 %177, %v36
    %v179 = vpop.permute.xlu0 %178
    %182 = vset.pattern.permute.xlu0 0
    %183 = vperm.xlu0 %182, %v37
    %v184 = vpop.permute.xlu0 %183
    %187 = vset.pattern.permute.xlu0 0
    %188 = vperm.xlu0 %187, %v38
    %v189 = vpop.permute.xlu0 %188
    %192 = vset.pattern.permute.xlu0 0
    %193 = vperm.xlu0 %192, %v39
    %v194 = vpop.permute.xlu0 %193
    %197 = vset.pattern.permute.xlu0 0
    %198 = vperm.xlu0 %197, %v40
    %v199 = vpop.permute.xlu0 %198
    %202 = vset.pattern.permute.xlu0 0
    %203 = vperm.xlu0 %202, %v41
    %v204 = vpop.permute.xlu0 %203
    %207 = vset.pattern.permute.xlu0 0
    %208 = vperm.xlu0 %207, %v42
    %v209 = vpop.permute.xlu0 %208
    %212 = vset.pattern.permute.xlu0 0
    %213 = vperm.xlu0 %212, %v43
    %v214 = vpop.permute.xlu0 %213
    %217 = vset.pattern.permute.xlu0 0
    %218 = vperm.xlu0 %217, %v44
    %v219 = vpop.permute.xlu0 %218
    %222 = vset.pattern.permute.xlu0 0
    %223 = vperm.xlu0 %222, %v45
    %v224 = vpop.permute.xlu0 %223
    %227 = vset.pattern.permute.xlu0 0
    %228 = vperm.xlu0 %227, %v46
    %v229 = vpop.permute.xlu0 %228
    %232 = vset.pattern.permute.xlu0 0
    %233 = vperm.xlu0 %232, %v47
    %v234 = vpop.permute.xlu0 %233
    %237 = vset.pattern.permute.xlu0 0
    %238 = vperm.xlu0 %237, %v48
    %v239 = vpop.permute.xlu0 %238
    %242 = vset.pattern.permute.xlu0 0
    %243 = vperm.xlu0 %242, %v49
    %v244 = vpop.permute.xlu0 %243
    %247 = vset.pattern.permute.xlu0 0
    %248 = vperm.xlu0 %247, %v50
    %v249 = vpop.permute.xlu0 %248
    %252 = vset.pattern.permute.xlu0 0
    %253 = vperm.xlu0 %252, %v51
    %v254 = vpop.permute.xlu0 %253
    %257 = vset.pattern.permute.xlu0 0
    %258 = vperm.xlu0 %257, %v52
    %v259 = vpop.permute.xlu0 %258
    %262 = vset.pattern.permute.xlu0 0
    %263 = vperm.xlu0 %262, %v53
    %v264 = vpop.permute.xlu0 %263
    %267 = vset.pattern.permute.xlu0 0
    %268 = vperm.xlu0 %267, %v54
    %v269 = vpop.permute.xlu0 %268
    %272 = vset.pattern.permute.xlu0 0
    %273 = vperm.xlu0 %272, %v55
    %v274 = vpop.permute.xlu0 %273
    %277 = vset.pattern.permute.xlu0 0
    %278 = vperm.xlu0 %277, %v56
    %v279 = vpop.permute.xlu0 %278
    %282 = vset.pattern.permute.xlu0 0
    %283 = vperm.xlu0 %282, %v57
    %v284 = vpop.permute.xlu0 %283
    %287 = vset.pattern.permute.xlu0 0
    %288 = vperm.xlu0 %287, %v58
    %v289 = vpop.permute.xlu0 %288
    %292 = vset.pattern.permute.xlu0 0
    %293 = vperm.xlu0 %292, %v59
    %v294 = vpop.permute.xlu0 %293
    %297 = vset.pattern.permute.xlu0 0
    %298 = vperm.xlu0 %297, %v60
    %v299 = vpop.permute.xlu0 %298
    %302 = vset.pattern.permute.xlu0 0
    %303 = vperm.xlu0 %302, %v61
    %v304 = vpop.permute.xlu0 %303
    %307 = vset.pattern.permute.xlu0 0
    %308 = vperm.xlu0 %307, %v62
    %v309 = vpop.permute.xlu0 %308
    %312 = vset.pattern.permute.xlu0 0
    %313 = vperm.xlu0 %312, %v63
    %v314 = vpop.permute.xlu0 %313
    %317 = vset.pattern.permute.xlu0 0
    %318 = vperm.xlu0 %317, %v64
    %v319 = vpop.permute.xlu0 %318
    %322 = vset.pattern.permute.xlu0 0
    %323 = vperm.xlu0 %322, %v65
    %v324 = vpop.permute.xlu0 %323
    %327 = vset.pattern.permute.xlu0 0
    %328 = vperm.xlu0 %327, %v66
    %v329 = vpop.permute.xlu0 %328
    %332 = vset.pattern.permute.xlu0 0
    %333 = vperm.xlu0 %332, %v67
    %v334 = vpop.permute.xlu0 %333
    %337 = vset.pattern.permute.xlu0 0
    %338 = vperm.xlu0 %337, %v68
    %v339 = vpop.permute.xlu0 %338
    %342 = vset.pattern.permute.xlu0 0
    %343 = vperm.xlu0 %342, %v69
    %v344 = vpop.permute.xlu0 %343
    %347 = vset.pattern.permute.xlu0 0
    %348 = vperm.xlu0 %347, %v70
    %v349 = vpop.permute.xlu0 %348
    %352 = vset.pattern.permute.xlu0 0
    %353 = vperm.xlu0 %352, %v71
    %v354 = vpop.permute.xlu0 %353
    %357 = vset.pattern.permute.xlu0 0
    %358 = vperm.xlu0 %357, %v72
    %v359 = vpop.permute.xlu0 %358
    %362 = vset.pattern.permute.xlu0 0
    %363 = vperm.xlu0 %362, %v73
    %v364 = vpop.permute.xlu0 %363
    %367 = vset.pattern.permute.xlu0 0
    %368 = vperm.xlu0 %367, %v74
    %v369 = vpop.permute.xlu0 %368
    %372 = vset.pattern.permute.xlu0 0
    %373 = vperm.xlu0 %372, %v75
    %v374 = vpop.permute.xlu0 %373
    %377 = vset.pattern.permute.xlu0 0
    %378 = vperm.xlu0 %377, %v76
    %v379 = vpop.permute.xlu0 %378
    %382 = vset.pattern.permute.xlu0 0
    %383 = vperm.xlu0 %382, %v77
    %v384 = vpop.permute.xlu0 %383
    %387 = vset.pattern.permute.xlu0 0
    %388 = vperm.xlu0 %387, %v78
    %v389 = vpop.permute.xlu0 %388
    %392 = vset.pattern.permute.xlu0 0
    %393 = vperm.xlu0 %392, %v79
    %v394 = vpop.permute.xlu0 %393
    %397 = vset.pattern.permute.xlu0 0
    %398 = vperm.xlu0 %397, %v80
    %v399 = vpop.permute.xlu0 %398
    %v401 = vlaneseq
    %v402 = vshrl.u32 %v401, 7
    %v403 = vsub.s32 0, %v402
    %v404 = vrot.slane %v16, %v403
    %v405 = vmul.f32 %v84, %v404
    %v406 = vmul.f32 %v89, %v404
    %v407 = vmul.f32 %v94, %v404
    %v408 = vmul.f32 %v99, %v404
    %v409 = vmul.f32 %v104, %v404
    %v410 = vmul.f32 %v109, %v404
    %v411 = vmul.f32 %v114, %v404
    %v412 = vmul.f32 %v119, %v404
    %v413 = vmul.f32 %v124, %v404
    %v414 = vmul.f32 %v129, %v404
    %v415 = vmul.f32 %v134, %v404
    %v416 = vmul.f32 %v139, %v404
    %v417 = vmul.f32 %v144, %v404
    %v418 = vmul.f32 %v149, %v404
    %v419 = vmul.f32 %v154, %v404
    %v420 = vmul.f32 %v159, %v404
    %v421 = vmul.f32 %v164, %v404
    %v422 = vmul.f32 %v169, %v404
    %v423 = vmul.f32 %v174, %v404
    %v424 = vmul.f32 %v179, %v404
    %v425 = vmul.f32 %v184, %v404
    %v426 = vmul.f32 %v189, %v404
    %v427 = vmul.f32 %v194, %v404
    %v428 = vmul.f32 %v199, %v404
    %v429 = vmul.f32 %v204, %v404
    %v430 = vmul.f32 %v209, %v404
    %v431 = vmul.f32 %v214, %v404
    %v432 = vmul.f32 %v219, %v404
    %v433 = vmul.f32 %v224, %v404
    %v434 = vmul.f32 %v229, %v404
    %v435 = vmul.f32 %v234, %v404
    %v436 = vmul.f32 %v239, %v404
    %v437 = vmul.f32 %v244, %v404
    %v438 = vmul.f32 %v249, %v404
    %v439 = vmul.f32 %v254, %v404
    %v440 = vmul.f32 %v259, %v404
    %v441 = vmul.f32 %v264, %v404
    %v442 = vmul.f32 %v269, %v404
    %v443 = vmul.f32 %v274, %v404
    %v444 = vmul.f32 %v279, %v404
    %v445 = vmul.f32 %v284, %v404
    %v446 = vmul.f32 %v289, %v404
    %v447 = vmul.f32 %v294, %v404
    %v448 = vmul.f32 %v299, %v404
    %v449 = vmul.f32 %v304, %v404
    %v450 = vmul.f32 %v309, %v404
    %v451 = vmul.f32 %v314, %v404
    %v452 = vmul.f32 %v319, %v404
    %v453 = vmul.f32 %v324, %v404
    %v454 = vmul.f32 %v329, %v404
    %v455 = vmul.f32 %v334, %v404
    %v456 = vmul.f32 %v339, %v404
    %v457 = vmul.f32 %v344, %v404
    %v458 = vmul.f32 %v349, %v404
    %v459 = vmul.f32 %v354, %v404
    %v460 = vmul.f32 %v359, %v404
    %v461 = vmul.f32 %v364, %v404
    %v462 = vmul.f32 %v369, %v404
    %v463 = vmul.f32 %v374, %v404
    %v464 = vmul.f32 %v379, %v404
    %v465 = vmul.f32 %v384, %v404
    %v466 = vmul.f32 %v389, %v404
    %v467 = vmul.f32 %v394, %v404
    %v468 = vmul.f32 %v399, %v404
    %469 = vset.pattern.permute.xlu0 1
    %470 = vperm.xlu0 %469, %v17
    %v471 = vpop.permute.xlu0 %470
    %473 = vset.pattern.permute.xlu0 1
    %474 = vperm.xlu0 %473, %v18
    %v475 = vpop.permute.xlu0 %474
    %477 = vset.pattern.permute.xlu0 1
    %478 = vperm.xlu0 %477, %v19
    %v479 = vpop.permute.xlu0 %478
    %481 = vset.pattern.permute.xlu0 1
    %482 = vperm.xlu0 %481, %v20
    %v483 = vpop.permute.xlu0 %482
    %485 = vset.pattern.permute.xlu0 1
    %486 = vperm.xlu0 %485, %v21
    %v487 = vpop.permute.xlu0 %486
    %489 = vset.pattern.permute.xlu0 1
    %490 = vperm.xlu0 %489, %v22
    %v491 = vpop.permute.xlu0 %490
    %493 = vset.pattern.permute.xlu0 1
    %494 = vperm.xlu0 %493, %v23
    %v495 = vpop.permute.xlu0 %494
    %497 = vset.pattern.permute.xlu0 1
    %498 = vperm.xlu0 %497, %v24
    %v499 = vpop.permute.xlu0 %498
    %501 = vset.pattern.permute.xlu0 1
    %502 = vperm.xlu0 %501, %v25
    %v503 = vpop.permute.xlu0 %502
    %505 = vset.pattern.permute.xlu0 1
    %506 = vperm.xlu0 %505, %v26
    %v507 = vpop.permute.xlu0 %506
    %509 = vset.pattern.permute.xlu0 1
    %510 = vperm.xlu0 %509, %v27
    %v511 = vpop.permute.xlu0 %510
    %513 = vset.pattern.permute.xlu0 1
    %514 = vperm.xlu0 %513, %v28
    %v515 = vpop.permute.xlu0 %514
    %517 = vset.pattern.permute.xlu0 1
    %518 = vperm.xlu0 %517, %v29
    %v519 = vpop.permute.xlu0 %518
    %521 = vset.pattern.permute.xlu0 1
    %522 = vperm.xlu0 %521, %v30
    %v523 = vpop.permute.xlu0 %522
    %525 = vset.pattern.permute.xlu0 1
    %526 = vperm.xlu0 %525, %v31
    %v527 = vpop.permute.xlu0 %526
    %529 = vset.pattern.permute.xlu0 1
    %530 = vperm.xlu0 %529, %v32
    %v531 = vpop.permute.xlu0 %530
    %533 = vset.pattern.permute.xlu0 1
    %534 = vperm.xlu0 %533, %v33
    %v535 = vpop.permute.xlu0 %534
    %537 = vset.pattern.permute.xlu0 1
    %538 = vperm.xlu0 %537, %v34
    %v539 = vpop.permute.xlu0 %538
    %541 = vset.pattern.permute.xlu0 1
    %542 = vperm.xlu0 %541, %v35
    %v543 = vpop.permute.xlu0 %542
    %545 = vset.pattern.permute.xlu0 1
    %546 = vperm.xlu0 %545, %v36
    %v547 = vpop.permute.xlu0 %546
    %549 = vset.pattern.permute.xlu0 1
    %550 = vperm.xlu0 %549, %v37
    %v551 = vpop.permute.xlu0 %550
    %553 = vset.pattern.permute.xlu0 1
    %554 = vperm.xlu0 %553, %v38
    %v555 = vpop.permute.xlu0 %554
    %557 = vset.pattern.permute.xlu0 1
    %558 = vperm.xlu0 %557, %v39
    %v559 = vpop.permute.xlu0 %558
    %561 = vset.pattern.permute.xlu0 1
    %562 = vperm.xlu0 %561, %v40
    %v563 = vpop.permute.xlu0 %562
    %565 = vset.pattern.permute.xlu0 1
    %566 = vperm.xlu0 %565, %v41
    %v567 = vpop.permute.xlu0 %566
    %569 = vset.pattern.permute.xlu0 1
    %570 = vperm.xlu0 %569, %v42
    %v571 = vpop.permute.xlu0 %570
    %573 = vset.pattern.permute.xlu0 1
    %574 = vperm.xlu0 %573, %v43
    %v575 = vpop.permute.xlu0 %574
    %577 = vset.pattern.permute.xlu0 1
    %578 = vperm.xlu0 %577, %v44
    %v579 = vpop.permute.xlu0 %578
    %581 = vset.pattern.permute.xlu0 1
    %582 = vperm.xlu0 %581, %v45
    %v583 = vpop.permute.xlu0 %582
    %585 = vset.pattern.permute.xlu0 1
    %586 = vperm.xlu0 %585, %v46
    %v587 = vpop.permute.xlu0 %586
    %589 = vset.pattern.permute.xlu0 1
    %590 = vperm.xlu0 %589, %v47
    %v591 = vpop.permute.xlu0 %590
    %593 = vset.pattern.permute.xlu0 1
    %594 = vperm.xlu0 %593, %v48
    %v595 = vpop.permute.xlu0 %594
    %597 = vset.pattern.permute.xlu0 1
    %598 = vperm.xlu0 %597, %v49
    %v599 = vpop.permute.xlu0 %598
    %601 = vset.pattern.permute.xlu0 1
    %602 = vperm.xlu0 %601, %v50
    %v603 = vpop.permute.xlu0 %602
    %605 = vset.pattern.permute.xlu0 1
    %606 = vperm.xlu0 %605, %v51
    %v607 = vpop.permute.xlu0 %606
    %609 = vset.pattern.permute.xlu0 1
    %610 = vperm.xlu0 %609, %v52
    %v611 = vpop.permute.xlu0 %610
    %613 = vset.pattern.permute.xlu0 1
    %614 = vperm.xlu0 %613, %v53
    %v615 = vpop.permute.xlu0 %614
    %617 = vset.pattern.permute.xlu0 1
    %618 = vperm.xlu0 %617, %v54
    %v619 = vpop.permute.xlu0 %618
    %621 = vset.pattern.permute.xlu0 1
    %622 = vperm.xlu0 %621, %v55
    %v623 = vpop.permute.xlu0 %622
    %625 = vset.pattern.permute.xlu0 1
    %626 = vperm.xlu0 %625, %v56
    %v627 = vpop.permute.xlu0 %626
    %629 = vset.pattern.permute.xlu0 1
    %630 = vperm.xlu0 %629, %v57
    %v631 = vpop.permute.xlu0 %630
    %633 = vset.pattern.permute.xlu0 1
    %634 = vperm.xlu0 %633, %v58
    %v635 = vpop.permute.xlu0 %634
    %637 = vset.pattern.permute.xlu0 1
    %638 = vperm.xlu0 %637, %v59
    %v639 = vpop.permute.xlu0 %638
    %641 = vset.pattern.permute.xlu0 1
    %642 = vperm.xlu0 %641, %v60
    %v643 = vpop.permute.xlu0 %642
    %645 = vset.pattern.permute.xlu0 1
    %646 = vperm.xlu0 %645, %v61
    %v647 = vpop.permute.xlu0 %646
    %649 = vset.pattern.permute.xlu0 1
    %650 = vperm.xlu0 %649, %v62
    %v651 = vpop.permute.xlu0 %650
    %653 = vset.pattern.permute.xlu0 1
    %654 = vperm.xlu0 %653, %v63
    %v655 = vpop.permute.xlu0 %654
    %657 = vset.pattern.permute.xlu0 1
    %658 = vperm.xlu0 %657, %v64
    %v659 = vpop.permute.xlu0 %658
    %661 = vset.pattern.permute.xlu0 1
    %662 = vperm.xlu0 %661, %v65
    %v663 = vpop.permute.xlu0 %662
    %665 = vset.pattern.permute.xlu0 1
    %666 = vperm.xlu0 %665, %v66
    %v667 = vpop.permute.xlu0 %666
    %669 = vset.pattern.permute.xlu0 1
    %670 = vperm.xlu0 %669, %v67
    %v671 = vpop.permute.xlu0 %670
    %673 = vset.pattern.permute.xlu0 1
    %674 = vperm.xlu0 %673, %v68
    %v675 = vpop.permute.xlu0 %674
    %677 = vset.pattern.permute.xlu0 1
    %678 = vperm.xlu0 %677, %v69
    %v679 = vpop.permute.xlu0 %678
    %681 = vset.pattern.permute.xlu0 1
    %682 = vperm.xlu0 %681, %v70
    %v683 = vpop.permute.xlu0 %682
    %685 = vset.pattern.permute.xlu0 1
    %686 = vperm.xlu0 %685, %v71
    %v687 = vpop.permute.xlu0 %686
    %689 = vset.pattern.permute.xlu0 1
    %690 = vperm.xlu0 %689, %v72
    %v691 = vpop.permute.xlu0 %690
    %693 = vset.pattern.permute.xlu0 1
    %694 = vperm.xlu0 %693, %v73
    %v695 = vpop.permute.xlu0 %694
    %697 = vset.pattern.permute.xlu0 1
    %698 = vperm.xlu0 %697, %v74
    %v699 = vpop.permute.xlu0 %698
    %701 = vset.pattern.permute.xlu0 1
    %702 = vperm.xlu0 %701, %v75
    %v703 = vpop.permute.xlu0 %702
    %705 = vset.pattern.permute.xlu0 1
    %706 = vperm.xlu0 %705, %v76
    %v707 = vpop.permute.xlu0 %706
    %709 = vset.pattern.permute.xlu0 1
    %710 = vperm.xlu0 %709, %v77
    %v711 = vpop.permute.xlu0 %710
    %713 = vset.pattern.permute.xlu0 1
    %714 = vperm.xlu0 %713, %v78
    %v715 = vpop.permute.xlu0 %714
    %717 = vset.pattern.permute.xlu0 1
    %718 = vperm.xlu0 %717, %v79
    %v719 = vpop.permute.xlu0 %718
    %721 = vset.pattern.permute.xlu0 1
    %722 = vperm.xlu0 %721, %v80
    %v723 = vpop.permute.xlu0 %722
    %v725 = vlaneseq
    %v726 = vshrl.u32 %v725, 7
    %v727 = vsub.s32 1, %v726
    %v728 = vrot.slane %v16, %v727
    %v729 = vmul.f32 %v471, %v728
    %v730 = vmul.f32 %v475, %v728
    %v731 = vmul.f32 %v479, %v728
    %v732 = vmul.f32 %v483, %v728
    %v733 = vmul.f32 %v487, %v728
    %v734 = vmul.f32 %v491, %v728
    %v735 = vmul.f32 %v495, %v728
    %v736 = vmul.f32 %v499, %v728
    %v737 = vmul.f32 %v503, %v728
    %v738 = vmul.f32 %v507, %v728
    %v739 = vmul.f32 %v511, %v728
    %v740 = vmul.f32 %v515, %v728
    %v741 = vmul.f32 %v519, %v728
    %v742 = vmul.f32 %v523, %v728
    %v743 = vmul.f32 %v527, %v728
    %v744 = vmul.f32 %v531, %v728
    %v745 = vmul.f32 %v535, %v728
    %v746 = vmul.f32 %v539, %v728
    %v747 = vmul.f32 %v543, %v728
    %v748 = vmul.f32 %v547, %v728
    %v749 = vmul.f32 %v551, %v728
    %v750 = vmul.f32 %v555, %v728
    %v751 = vmul.f32 %v559, %v728
    %v752 = vmul.f32 %v563, %v728
    %v753 = vmul.f32 %v567, %v728
    %v754 = vmul.f32 %v571, %v728
    %v755 = vmul.f32 %v575, %v728
    %v756 = vmul.f32 %v579, %v728
    %v757 = vmul.f32 %v583, %v728
    %v758 = vmul.f32 %v587, %v728
    %v759 = vmul.f32 %v591, %v728
    %v760 = vmul.f32 %v595, %v728
    %v761 = vmul.f32 %v599, %v728
    %v762 = vmul.f32 %v603, %v728
    %v763 = vmul.f32 %v607, %v728
    %v764 = vmul.f32 %v611, %v728
    %v765 = vmul.f32 %v615, %v728
    %v766 = vmul.f32 %v619, %v728
    %v767 = vmul.f32 %v623, %v728
    %v768 = vmul.f32 %v627, %v728
    %v769 = vmul.f32 %v631, %v728
    %v770 = vmul.f32 %v635, %v728
    %v771 = vmul.f32 %v639, %v728
    %v772 = vmul.f32 %v643, %v728
    %v773 = vmul.f32 %v647, %v728
    %v774 = vmul.f32 %v651, %v728
    %v775 = vmul.f32 %v655, %v728
    %v776 = vmul.f32 %v659, %v728
    %v777 = vmul.f32 %v663, %v728
    %v778 = vmul.f32 %v667, %v728
    %v779 = vmul.f32 %v671, %v728
    %v780 = vmul.f32 %v675, %v728
    %v781 = vmul.f32 %v679, %v728
    %v782 = vmul.f32 %v683, %v728
    %v783 = vmul.f32 %v687, %v728
    %v784 = vmul.f32 %v691, %v728
    %v785 = vmul.f32 %v695, %v728
    %v786 = vmul.f32 %v699, %v728
    %v787 = vmul.f32 %v703, %v728
    %v788 = vmul.f32 %v707, %v728
    %v789 = vmul.f32 %v711, %v728
    %v790 = vmul.f32 %v715, %v728
    %v791 = vmul.f32 %v719, %v728
    %v792 = vmul.f32 %v723, %v728
    %v793 = vadd.f32 %v405, %v729
    %v794 = vadd.f32 %v406, %v730
    %v795 = vadd.f32 %v407, %v731
    %v796 = vadd.f32 %v408, %v732
    %v797 = vadd.f32 %v409, %v733
    %v798 = vadd.f32 %v410, %v734
    %v799 = vadd.f32 %v411, %v735
    %v800 = vadd.f32 %v412, %v736
    %v801 = vadd.f32 %v413, %v737
    %v802 = vadd.f32 %v414, %v738
    %v803 = vadd.f32 %v415, %v739
    %v804 = vadd.f32 %v416, %v740
    %v805 = vadd.f32 %v417, %v741
    %v806 = vadd.f32 %v418, %v742
    %v807 = vadd.f32 %v419, %v743
    %v808 = vadd.f32 %v420, %v744
    %v809 = vadd.f32 %v421, %v745
    %v810 = vadd.f32 %v422, %v746
    %v811 = vadd.f32 %v423, %v747
    %v812 = vadd.f32 %v424, %v748
    %v813 = vadd.f32 %v425, %v749
    %v814 = vadd.f32 %v426, %v750
    %v815 = vadd.f32 %v427, %v751
    %v816 = vadd.f32 %v428, %v752
    %v817 = vadd.f32 %v429, %v753
    %v818 = vadd.f32 %v430, %v754
    %v819 = vadd.f32 %v431, %v755
    %v820 = vadd.f32 %v432, %v756
    %v821 = vadd.f32 %v433, %v757
    %v822 = vadd.f32 %v434, %v758
    %v823 = vadd.f32 %v435, %v759
    %v824 = vadd.f32 %v436, %v760
    %v825 = vadd.f32 %v437, %v761
    %v826 = vadd.f32 %v438, %v762
    %v827 = vadd.f32 %v439, %v763
    %v828 = vadd.f32 %v440, %v764
    %v829 = vadd.f32 %v441, %v765
    %v830 = vadd.f32 %v442, %v766
    %v831 = vadd.f32 %v443, %v767
    %v832 = vadd.f32 %v444, %v768
    %v833 = vadd.f32 %v445, %v769
    %v834 = vadd.f32 %v446, %v770
    %v835 = vadd.f32 %v447, %v771
    %v836 = vadd.f32 %v448, %v772
    %v837 = vadd.f32 %v449, %v773
    %v838 = vadd.f32 %v450, %v774
    %v839 = vadd.f32 %v451, %v775
    %v840 = vadd.f32 %v452, %v776
    %v841 = vadd.f32 %v453, %v777
    %v842 = vadd.f32 %v454, %v778
    %v843 = vadd.f32 %v455, %v779
    %v844 = vadd.f32 %v456, %v780
    %v845 = vadd.f32 %v457, %v781
    %v846 = vadd.f32 %v458, %v782
    %v847 = vadd.f32 %v459, %v783
    %v848 = vadd.f32 %v460, %v784
    %v849 = vadd.f32 %v461, %v785
    %v850 = vadd.f32 %v462, %v786
    %v851 = vadd.f32 %v463, %v787
    %v852 = vadd.f32 %v464, %v788
    %v853 = vadd.f32 %v465, %v789
    %v854 = vadd.f32 %v466, %v790
    %v855 = vadd.f32 %v467, %v791
    %v856 = vadd.f32 %v468, %v792
    %857 = vset.pattern.permute.xlu0 2
    %858 = vperm.xlu0 %857, %v17
    %v859 = vpop.permute.xlu0 %858
    %861 = vset.pattern.permute.xlu0 2
    %862 = vperm.xlu0 %861, %v18
    %v863 = vpop.permute.xlu0 %862
    %865 = vset.pattern.permute.xlu0 2
    %866 = vperm.xlu0 %865, %v19
    %v867 = vpop.permute.xlu0 %866
    %869 = vset.pattern.permute.xlu0 2
    %870 = vperm.xlu0 %869, %v20
    %v871 = vpop.permute.xlu0 %870
    %873 = vset.pattern.permute.xlu0 2
    %874 = vperm.xlu0 %873, %v21
    %v875 = vpop.permute.xlu0 %874
    %877 = vset.pattern.permute.xlu0 2
    %878 = vperm.xlu0 %877, %v22
    %v879 = vpop.permute.xlu0 %878
    %881 = vset.pattern.permute.xlu0 2
    %882 = vperm.xlu0 %881, %v23
    %v883 = vpop.permute.xlu0 %882
    %885 = vset.pattern.permute.xlu0 2
    %886 = vperm.xlu0 %885, %v24
    %v887 = vpop.permute.xlu0 %886
    %889 = vset.pattern.permute.xlu0 2
    %890 = vperm.xlu0 %889, %v25
    %v891 = vpop.permute.xlu0 %890
    %893 = vset.pattern.permute.xlu0 2
    %894 = vperm.xlu0 %893, %v26
    %v895 = vpop.permute.xlu0 %894
    %897 = vset.pattern.permute.xlu0 2
    %898 = vperm.xlu0 %897, %v27
    %v899 = vpop.permute.xlu0 %898
    %901 = vset.pattern.permute.xlu0 2
    %902 = vperm.xlu0 %901, %v28
    %v903 = vpop.permute.xlu0 %902
    %905 = vset.pattern.permute.xlu0 2
    %906 = vperm.xlu0 %905, %v29
    %v907 = vpop.permute.xlu0 %906
    %909 = vset.pattern.permute.xlu0 2
    %910 = vperm.xlu0 %909, %v30
    %v911 = vpop.permute.xlu0 %910
    %913 = vset.pattern.permute.xlu0 2
    %914 = vperm.xlu0 %913, %v31
    %v915 = vpop.permute.xlu0 %914
    %917 = vset.pattern.permute.xlu0 2
    %918 = vperm.xlu0 %917, %v32
    %v919 = vpop.permute.xlu0 %918
    %921 = vset.pattern.permute.xlu0 2
    %922 = vperm.xlu0 %921, %v33
    %v923 = vpop.permute.xlu0 %922
    %925 = vset.pattern.permute.xlu0 2
    %926 = vperm.xlu0 %925, %v34
    %v927 = vpop.permute.xlu0 %926
    %929 = vset.pattern.permute.xlu0 2
    %930 = vperm.xlu0 %929, %v35
    %v931 = vpop.permute.xlu0 %930
    %933 = vset.pattern.permute.xlu0 2
    %934 = vperm.xlu0 %933, %v36
    %v935 = vpop.permute.xlu0 %934
    %937 = vset.pattern.permute.xlu0 2
    %938 = vperm.xlu0 %937, %v37
    %v939 = vpop.permute.xlu0 %938
    %941 = vset.pattern.permute.xlu0 2
    %942 = vperm.xlu0 %941, %v38
    %v943 = vpop.permute.xlu0 %942
    %945 = vset.pattern.permute.xlu0 2
    %946 = vperm.xlu0 %945, %v39
    %v947 = vpop.permute.xlu0 %946
    %949 = vset.pattern.permute.xlu0 2
    %950 = vperm.xlu0 %949, %v40
    %v951 = vpop.permute.xlu0 %950
    %953 = vset.pattern.permute.xlu0 2
    %954 = vperm.xlu0 %953, %v41
    %v955 = vpop.permute.xlu0 %954
    %957 = vset.pattern.permute.xlu0 2
    %958 = vperm.xlu0 %957, %v42
    %v959 = vpop.permute.xlu0 %958
    %961 = vset.pattern.permute.xlu0 2
    %962 = vperm.xlu0 %961, %v43
    %v963 = vpop.permute.xlu0 %962
    %965 = vset.pattern.permute.xlu0 2
    %966 = vperm.xlu0 %965, %v44
    %v967 = vpop.permute.xlu0 %966
    %969 = vset.pattern.permute.xlu0 2
    %970 = vperm.xlu0 %969, %v45
    %v971 = vpop.permute.xlu0 %970
    %973 = vset.pattern.permute.xlu0 2
    %974 = vperm.xlu0 %973, %v46
    %v975 = vpop.permute.xlu0 %974
    %977 = vset.pattern.permute.xlu0 2
    %978 = vperm.xlu0 %977, %v47
    %v979 = vpop.permute.xlu0 %978
    %981 = vset.pattern.permute.xlu0 2
    %982 = vperm.xlu0 %981, %v48
    %v983 = vpop.permute.xlu0 %982
    %985 = vset.pattern.permute.xlu0 2
    %986 = vperm.xlu0 %985, %v49
    %v987 = vpop.permute.xlu0 %986
    %989 = vset.pattern.permute.xlu0 2
    %990 = vperm.xlu0 %989, %v50
    %v991 = vpop.permute.xlu0 %990
    %993 = vset.pattern.permute.xlu0 2
    %994 = vperm.xlu0 %993, %v51
    %v995 = vpop.permute.xlu0 %994
    %997 = vset.pattern.permute.xlu0 2
    %998 = vperm.xlu0 %997, %v52
    %v999 = vpop.permute.xlu0 %998
    %1001 = vset.pattern.permute.xlu0 2
    %1002 = vperm.xlu0 %1001, %v53
    %v1003 = vpop.permute.xlu0 %1002
    %1005 = vset.pattern.permute.xlu0 2
    %1006 = vperm.xlu0 %1005, %v54
    %v1007 = vpop.permute.xlu0 %1006
    %1009 = vset.pattern.permute.xlu0 2
    %1010 = vperm.xlu0 %1009, %v55
    %v1011 = vpop.permute.xlu0 %1010
    %1013 = vset.pattern.permute.xlu0 2
    %1014 = vperm.xlu0 %1013, %v56
    %v1015 = vpop.permute.xlu0 %1014
    %1017 = vset.pattern.permute.xlu0 2
    %1018 = vperm.xlu0 %1017, %v57
    %v1019 = vpop.permute.xlu0 %1018
    %1021 = vset.pattern.permute.xlu0 2
    %1022 = vperm.xlu0 %1021, %v58
    %v1023 = vpop.permute.xlu0 %1022
    %1025 = vset.pattern.permute.xlu0 2
    %1026 = vperm.xlu0 %1025, %v59
    %v1027 = vpop.permute.xlu0 %1026
    %1029 = vset.pattern.permute.xlu0 2
    %1030 = vperm.xlu0 %1029, %v60
    %v1031 = vpop.permute.xlu0 %1030
    %1033 = vset.pattern.permute.xlu0 2
    %1034 = vperm.xlu0 %1033, %v61
    %v1035 = vpop.permute.xlu0 %1034
    %1037 = vset.pattern.permute.xlu0 2
    %1038 = vperm.xlu0 %1037, %v62
    %v1039 = vpop.permute.xlu0 %1038
    %1041 = vset.pattern.permute.xlu0 2
    %1042 = vperm.xlu0 %1041, %v63
    %v1043 = vpop.permute.xlu0 %1042
    %1045 = vset.pattern.permute.xlu0 2
    %1046 = vperm.xlu0 %1045, %v64
    %v1047 = vpop.permute.xlu0 %1046
    %1049 = vset.pattern.permute.xlu0 2
    %1050 = vperm.xlu0 %1049, %v65
    %v1051 = vpop.permute.xlu0 %1050
    %1053 = vset.pattern.permute.xlu0 2
    %1054 = vperm.xlu0 %1053, %v66
    %v1055 = vpop.permute.xlu0 %1054
    %1057 = vset.pattern.permute.xlu0 2
    %1058 = vperm.xlu0 %1057, %v67
    %v1059 = vpop.permute.xlu0 %1058
    %1061 = vset.pattern.permute.xlu0 2
    %1062 = vperm.xlu0 %1061, %v68
    %v1063 = vpop.permute.xlu0 %1062
    %1065 = vset.pattern.permute.xlu0 2
    %1066 = vperm.xlu0 %1065, %v69
    %v1067 = vpop.permute.xlu0 %1066
    %1069 = vset.pattern.permute.xlu0 2
    %1070 = vperm.xlu0 %1069, %v70
    %v1071 = vpop.permute.xlu0 %1070
    %1073 = vset.pattern.permute.xlu0 2
    %1074 = vperm.xlu0 %1073, %v71
    %v1075 = vpop.permute.xlu0 %1074
    %1077 = vset.pattern.permute.xlu0 2
    %1078 = vperm.xlu0 %1077, %v72
    %v1079 = vpop.permute.xlu0 %1078
    %1081 = vset.pattern.permute.xlu0 2
    %1082 = vperm.xlu0 %1081, %v73
    %v1083 = vpop.permute.xlu0 %1082
    %1085 = vset.pattern.permute.xlu0 2
    %1086 = vperm.xlu0 %1085, %v74
    %v1087 = vpop.permute.xlu0 %1086
    %1089 = vset.pattern.permute.xlu0 2
    %1090 = vperm.xlu0 %1089, %v75
    %v1091 = vpop.permute.xlu0 %1090
    %1093 = vset.pattern.permute.xlu0 2
    %1094 = vperm.xlu0 %1093, %v76
    %v1095 = vpop.permute.xlu0 %1094
    %1097 = vset.pattern.permute.xlu0 2
    %1098 = vperm.xlu0 %1097, %v77
    %v1099 = vpop.permute.xlu0 %1098
    %1101 = vset.pattern.permute.xlu0 2
    %1102 = vperm.xlu0 %1101, %v78
    %v1103 = vpop.permute.xlu0 %1102
    %1105 = vset.pattern.permute.xlu0 2
    %1106 = vperm.xlu0 %1105, %v79
    %v1107 = vpop.permute.xlu0 %1106
    %1109 = vset.pattern.permute.xlu0 2
    %1110 = vperm.xlu0 %1109, %v80
    %v1111 = vpop.permute.xlu0 %1110
    %v1113 = vlaneseq
    %v1114 = vshrl.u32 %v1113, 7
    %v1115 = vsub.s32 2, %v1114
    %v1116 = vrot.slane %v16, %v1115
    %v1117 = vmul.f32 %v859, %v1116
    %v1118 = vmul.f32 %v863, %v1116
    %v1119 = vmul.f32 %v867, %v1116
    %v1120 = vmul.f32 %v871, %v1116
    %v1121 = vmul.f32 %v875, %v1116
    %v1122 = vmul.f32 %v879, %v1116
    %v1123 = vmul.f32 %v883, %v1116
    %v1124 = vmul.f32 %v887, %v1116
    %v1125 = vmul.f32 %v891, %v1116
    %v1126 = vmul.f32 %v895, %v1116
    %v1127 = vmul.f32 %v899, %v1116
    %v1128 = vmul.f32 %v903, %v1116
    %v1129 = vmul.f32 %v907, %v1116
    %v1130 = vmul.f32 %v911, %v1116
    %v1131 = vmul.f32 %v915, %v1116
    %v1132 = vmul.f32 %v919, %v1116
    %v1133 = vmul.f32 %v923, %v1116
    %v1134 = vmul.f32 %v927, %v1116
    %v1135 = vmul.f32 %v931, %v1116
    %v1136 = vmul.f32 %v935, %v1116
    %v1137 = vmul.f32 %v939, %v1116
    %v1138 = vmul.f32 %v943, %v1116
    %v1139 = vmul.f32 %v947, %v1116
    %v1140 = vmul.f32 %v951, %v1116
    %v1141 = vmul.f32 %v955, %v1116
    %v1142 = vmul.f32 %v959, %v1116
    %v1143 = vmul.f32 %v963, %v1116
    %v1144 = vmul.f32 %v967, %v1116
    %v1145 = vmul.f32 %v971, %v1116
    %v1146 = vmul.f32 %v975, %v1116
    %v1147 = vmul.f32 %v979, %v1116
    %v1148 = vmul.f32 %v983, %v1116
    %v1149 = vmul.f32 %v987, %v1116
    %v1150 = vmul.f32 %v991, %v1116
    %v1151 = vmul.f32 %v995, %v1116
    %v1152 = vmul.f32 %v999, %v1116
    %v1153 = vmul.f32 %v1003, %v1116
    %v1154 = vmul.f32 %v1007, %v1116
    %v1155 = vmul.f32 %v1011, %v1116
    %v1156 = vmul.f32 %v1015, %v1116
    %v1157 = vmul.f32 %v1019, %v1116
    %v1158 = vmul.f32 %v1023, %v1116
    %v1159 = vmul.f32 %v1027, %v1116
    %v1160 = vmul.f32 %v1031, %v1116
    %v1161 = vmul.f32 %v1035, %v1116
    %v1162 = vmul.f32 %v1039, %v1116
    %v1163 = vmul.f32 %v1043, %v1116
    %v1164 = vmul.f32 %v1047, %v1116
    %v1165 = vmul.f32 %v1051, %v1116
    %v1166 = vmul.f32 %v1055, %v1116
    %v1167 = vmul.f32 %v1059, %v1116
    %v1168 = vmul.f32 %v1063, %v1116
    %v1169 = vmul.f32 %v1067, %v1116
    %v1170 = vmul.f32 %v1071, %v1116
    %v1171 = vmul.f32 %v1075, %v1116
    %v1172 = vmul.f32 %v1079, %v1116
    %v1173 = vmul.f32 %v1083, %v1116
    %v1174 = vmul.f32 %v1087, %v1116
    %v1175 = vmul.f32 %v1091, %v1116
    %v1176 = vmul.f32 %v1095, %v1116
    %v1177 = vmul.f32 %v1099, %v1116
    %v1178 = vmul.f32 %v1103, %v1116
    %v1179 = vmul.f32 %v1107, %v1116
    %v1180 = vmul.f32 %v1111, %v1116
    %v1181 = vadd.f32 %v793, %v1117
    %v1182 = vadd.f32 %v794, %v1118
    %v1183 = vadd.f32 %v795, %v1119
    %v1184 = vadd.f32 %v796, %v1120
    %v1185 = vadd.f32 %v797, %v1121
    %v1186 = vadd.f32 %v798, %v1122
    %v1187 = vadd.f32 %v799, %v1123
    %v1188 = vadd.f32 %v800, %v1124
    %v1189 = vadd.f32 %v801, %v1125
    %v1190 = vadd.f32 %v802, %v1126
    %v1191 = vadd.f32 %v803, %v1127
    %v1192 = vadd.f32 %v804, %v1128
    %v1193 = vadd.f32 %v805, %v1129
    %v1194 = vadd.f32 %v806, %v1130
    %v1195 = vadd.f32 %v807, %v1131
    %v1196 = vadd.f32 %v808, %v1132
    %v1197 = vadd.f32 %v809, %v1133
    %v1198 = vadd.f32 %v810, %v1134
    %v1199 = vadd.f32 %v811, %v1135
    %v1200 = vadd.f32 %v812, %v1136
    %v1201 = vadd.f32 %v813, %v1137
    %v1202 = vadd.f32 %v814, %v1138
    %v1203 = vadd.f32 %v815, %v1139
    %v1204 = vadd.f32 %v816, %v1140
    %v1205 = vadd.f32 %v817, %v1141
    %v1206 = vadd.f32 %v818, %v1142
    %v1207 = vadd.f32 %v819, %v1143
    %v1208 = vadd.f32 %v820, %v1144
    %v1209 = vadd.f32 %v821, %v1145
    %v1210 = vadd.f32 %v822, %v1146
    %v1211 = vadd.f32 %v823, %v1147
    %v1212 = vadd.f32 %v824, %v1148
    %v1213 = vadd.f32 %v825, %v1149
    %v1214 = vadd.f32 %v826, %v1150
    %v1215 = vadd.f32 %v827, %v1151
    %v1216 = vadd.f32 %v828, %v1152
    %v1217 = vadd.f32 %v829, %v1153
    %v1218 = vadd.f32 %v830, %v1154
    %v1219 = vadd.f32 %v831, %v1155
    %v1220 = vadd.f32 %v832, %v1156
    %v1221 = vadd.f32 %v833, %v1157
    %v1222 = vadd.f32 %v834, %v1158
    %v1223 = vadd.f32 %v835, %v1159
    %v1224 = vadd.f32 %v836, %v1160
    %v1225 = vadd.f32 %v837, %v1161
    %v1226 = vadd.f32 %v838, %v1162
    %v1227 = vadd.f32 %v839, %v1163
    %v1228 = vadd.f32 %v840, %v1164
    %v1229 = vadd.f32 %v841, %v1165
    %v1230 = vadd.f32 %v842, %v1166
    %v1231 = vadd.f32 %v843, %v1167
    %v1232 = vadd.f32 %v844, %v1168
    %v1233 = vadd.f32 %v845, %v1169
    %v1234 = vadd.f32 %v846, %v1170
    %v1235 = vadd.f32 %v847, %v1171
    %v1236 = vadd.f32 %v848, %v1172
    %v1237 = vadd.f32 %v849, %v1173
    %v1238 = vadd.f32 %v850, %v1174
    %v1239 = vadd.f32 %v851, %v1175
    %v1240 = vadd.f32 %v852, %v1176
    %v1241 = vadd.f32 %v853, %v1177
    %v1242 = vadd.f32 %v854, %v1178
    %v1243 = vadd.f32 %v855, %v1179
    %v1244 = vadd.f32 %v856, %v1180
    %1245 = vset.pattern.permute.xlu0 3
    %1246 = vperm.xlu0 %1245, %v17
    %v1247 = vpop.permute.xlu0 %1246
    %1249 = vset.pattern.permute.xlu0 3
    %1250 = vperm.xlu0 %1249, %v18
    %v1251 = vpop.permute.xlu0 %1250
    %1253 = vset.pattern.permute.xlu0 3
    %1254 = vperm.xlu0 %1253, %v19
    %v1255 = vpop.permute.xlu0 %1254
    %1257 = vset.pattern.permute.xlu0 3
    %1258 = vperm.xlu0 %1257, %v20
    %v1259 = vpop.permute.xlu0 %1258
    %1261 = vset.pattern.permute.xlu0 3
    %1262 = vperm.xlu0 %1261, %v21
    %v1263 = vpop.permute.xlu0 %1262
    %1265 = vset.pattern.permute.xlu0 3
    %1266 = vperm.xlu0 %1265, %v22
    %v1267 = vpop.permute.xlu0 %1266
    %1269 = vset.pattern.permute.xlu0 3
    %1270 = vperm.xlu0 %1269, %v23
    %v1271 = vpop.permute.xlu0 %1270
    %1273 = vset.pattern.permute.xlu0 3
    %1274 = vperm.xlu0 %1273, %v24
    %v1275 = vpop.permute.xlu0 %1274
    %1277 = vset.pattern.permute.xlu0 3
    %1278 = vperm.xlu0 %1277, %v25
    %v1279 = vpop.permute.xlu0 %1278
    %1281 = vset.pattern.permute.xlu0 3
    %1282 = vperm.xlu0 %1281, %v26
    %v1283 = vpop.permute.xlu0 %1282
    %1285 = vset.pattern.permute.xlu0 3
    %1286 = vperm.xlu0 %1285, %v27
    %v1287 = vpop.permute.xlu0 %1286
    %1289 = vset.pattern.permute.xlu0 3
    %1290 = vperm.xlu0 %1289, %v28
    %v1291 = vpop.permute.xlu0 %1290
    %1293 = vset.pattern.permute.xlu0 3
    %1294 = vperm.xlu0 %1293, %v29
    %v1295 = vpop.permute.xlu0 %1294
    %1297 = vset.pattern.permute.xlu0 3
    %1298 = vperm.xlu0 %1297, %v30
    %v1299 = vpop.permute.xlu0 %1298
    %1301 = vset.pattern.permute.xlu0 3
    %1302 = vperm.xlu0 %1301, %v31
    %v1303 = vpop.permute.xlu0 %1302
    %1305 = vset.pattern.permute.xlu0 3
    %1306 = vperm.xlu0 %1305, %v32
    %v1307 = vpop.permute.xlu0 %1306
    %1309 = vset.pattern.permute.xlu0 3
    %1310 = vperm.xlu0 %1309, %v33
    %v1311 = vpop.permute.xlu0 %1310
    %1313 = vset.pattern.permute.xlu0 3
    %1314 = vperm.xlu0 %1313, %v34
    %v1315 = vpop.permute.xlu0 %1314
    %1317 = vset.pattern.permute.xlu0 3
    %1318 = vperm.xlu0 %1317, %v35
    %v1319 = vpop.permute.xlu0 %1318
    %1321 = vset.pattern.permute.xlu0 3
    %1322 = vperm.xlu0 %1321, %v36
    %v1323 = vpop.permute.xlu0 %1322
    %1325 = vset.pattern.permute.xlu0 3
    %1326 = vperm.xlu0 %1325, %v37
    %v1327 = vpop.permute.xlu0 %1326
    %1329 = vset.pattern.permute.xlu0 3
    %1330 = vperm.xlu0 %1329, %v38
    %v1331 = vpop.permute.xlu0 %1330
    %1333 = vset.pattern.permute.xlu0 3
    %1334 = vperm.xlu0 %1333, %v39
    %v1335 = vpop.permute.xlu0 %1334
    %1337 = vset.pattern.permute.xlu0 3
    %1338 = vperm.xlu0 %1337, %v40
    %v1339 = vpop.permute.xlu0 %1338
    %1341 = vset.pattern.permute.xlu0 3
    %1342 = vperm.xlu0 %1341, %v41
    %v1343 = vpop.permute.xlu0 %1342
    %1345 = vset.pattern.permute.xlu0 3
    %1346 = vperm.xlu0 %1345, %v42
    %v1347 = vpop.permute.xlu0 %1346
    %1349 = vset.pattern.permute.xlu0 3
    %1350 = vperm.xlu0 %1349, %v43
    %v1351 = vpop.permute.xlu0 %1350
    %1353 = vset.pattern.permute.xlu0 3
    %1354 = vperm.xlu0 %1353, %v44
    %v1355 = vpop.permute.xlu0 %1354
    %1357 = vset.pattern.permute.xlu0 3
    %1358 = vperm.xlu0 %1357, %v45
    %v1359 = vpop.permute.xlu0 %1358
    %1361 = vset.pattern.permute.xlu0 3
    %1362 = vperm.xlu0 %1361, %v46
    %v1363 = vpop.permute.xlu0 %1362
    %1365 = vset.pattern.permute.xlu0 3
    %1366 = vperm.xlu0 %1365, %v47
    %v1367 = vpop.permute.xlu0 %1366
    %1369 = vset.pattern.permute.xlu0 3
    %1370 = vperm.xlu0 %1369, %v48
    %v1371 = vpop.permute.xlu0 %1370
    %1373 = vset.pattern.permute.xlu0 3
    %1374 = vperm.xlu0 %1373, %v49
    %v1375 = vpop.permute.xlu0 %1374
    %1377 = vset.pattern.permute.xlu0 3
    %1378 = vperm.xlu0 %1377, %v50
    %v1379 = vpop.permute.xlu0 %1378
    %1381 = vset.pattern.permute.xlu0 3
    %1382 = vperm.xlu0 %1381, %v51
    %v1383 = vpop.permute.xlu0 %1382
    %1385 = vset.pattern.permute.xlu0 3
    %1386 = vperm.xlu0 %1385, %v52
    %v1387 = vpop.permute.xlu0 %1386
    %1389 = vset.pattern.permute.xlu0 3
    %1390 = vperm.xlu0 %1389, %v53
    %v1391 = vpop.permute.xlu0 %1390
    %1393 = vset.pattern.permute.xlu0 3
    %1394 = vperm.xlu0 %1393, %v54
    %v1395 = vpop.permute.xlu0 %1394
    %1397 = vset.pattern.permute.xlu0 3
    %1398 = vperm.xlu0 %1397, %v55
    %v1399 = vpop.permute.xlu0 %1398
    %1401 = vset.pattern.permute.xlu0 3
    %1402 = vperm.xlu0 %1401, %v56
    %v1403 = vpop.permute.xlu0 %1402
    %1405 = vset.pattern.permute.xlu0 3
    %1406 = vperm.xlu0 %1405, %v57
    %v1407 = vpop.permute.xlu0 %1406
    %1409 = vset.pattern.permute.xlu0 3
    %1410 = vperm.xlu0 %1409, %v58
    %v1411 = vpop.permute.xlu0 %1410
    %1413 = vset.pattern.permute.xlu0 3
    %1414 = vperm.xlu0 %1413, %v59
    %v1415 = vpop.permute.xlu0 %1414
    %1417 = vset.pattern.permute.xlu0 3
    %1418 = vperm.xlu0 %1417, %v60
    %v1419 = vpop.permute.xlu0 %1418
    %1421 = vset.pattern.permute.xlu0 3
    %1422 = vperm.xlu0 %1421, %v61
    %v1423 = vpop.permute.xlu0 %1422
    %1425 = vset.pattern.permute.xlu0 3
    %1426 = vperm.xlu0 %1425, %v62
    %v1427 = vpop.permute.xlu0 %1426
    %1429 = vset.pattern.permute.xlu0 3
    %1430 = vperm.xlu0 %1429, %v63
    %v1431 = vpop.permute.xlu0 %1430
    %1433 = vset.pattern.permute.xlu0 3
    %1434 = vperm.xlu0 %1433, %v64
    %v1435 = vpop.permute.xlu0 %1434
    %1437 = vset.pattern.permute.xlu0 3
    %1438 = vperm.xlu0 %1437, %v65
    %v1439 = vpop.permute.xlu0 %1438
    %1441 = vset.pattern.permute.xlu0 3
    %1442 = vperm.xlu0 %1441, %v66
    %v1443 = vpop.permute.xlu0 %1442
    %1445 = vset.pattern.permute.xlu0 3
    %1446 = vperm.xlu0 %1445, %v67
    %v1447 = vpop.permute.xlu0 %1446
    %1449 = vset.pattern.permute.xlu0 3
    %1450 = vperm.xlu0 %1449, %v68
    %v1451 = vpop.permute.xlu0 %1450
    %1453 = vset.pattern.permute.xlu0 3
    %1454 = vperm.xlu0 %1453, %v69
    %v1455 = vpop.permute.xlu0 %1454
    %1457 = vset.pattern.permute.xlu0 3
    %1458 = vperm.xlu0 %1457, %v70
    %v1459 = vpop.permute.xlu0 %1458
    %1461 = vset.pattern.permute.xlu0 3
    %1462 = vperm.xlu0 %1461, %v71
    %v1463 = vpop.permute.xlu0 %1462
    %1465 = vset.pattern.permute.xlu0 3
    %1466 = vperm.xlu0 %1465, %v72
    %v1467 = vpop.permute.xlu0 %1466
    %1469 = vset.pattern.permute.xlu0 3
    %1470 = vperm.xlu0 %1469, %v73
    %v1471 = vpop.permute.xlu0 %1470
    %1473 = vset.pattern.permute.xlu0 3
    %1474 = vperm.xlu0 %1473, %v74
    %v1475 = vpop.permute.xlu0 %1474
    %1477 = vset.pattern.permute.xlu0 3
    %1478 = vperm.xlu0 %1477, %v75
    %v1479 = vpop.permute.xlu0 %1478
    %1481 = vset.pattern.permute.xlu0 3
    %1482 = vperm.xlu0 %1481, %v76
    %v1483 = vpop.permute.xlu0 %1482
    %1485 = vset.pattern.permute.xlu0 3
    %1486 = vperm.xlu0 %1485, %v77
    %v1487 = vpop.permute.xlu0 %1486
    %1489 = vset.pattern.permute.xlu0 3
    %1490 = vperm.xlu0 %1489, %v78
    %v1491 = vpop.permute.xlu0 %1490
    %1493 = vset.pattern.permute.xlu0 3
    %1494 = vperm.xlu0 %1493, %v79
    %v1495 = vpop.permute.xlu0 %1494
    %1497 = vset.pattern.permute.xlu0 3
    %1498 = vperm.xlu0 %1497, %v80
    %v1499 = vpop.permute.xlu0 %1498
    %v1501 = vadd.f32 %v1181, %v1247
    %v1502 = vadd.f32 %v1182, %v1251
    %v1503 = vadd.f32 %v1183, %v1255
    %v1504 = vadd.f32 %v1184, %v1259
    %v1505 = vadd.f32 %v1185, %v1263
    %v1506 = vadd.f32 %v1186, %v1267
    %v1507 = vadd.f32 %v1187, %v1271
    %v1508 = vadd.f32 %v1188, %v1275
    %v1509 = vadd.f32 %v1189, %v1279
    %v1510 = vadd.f32 %v1190, %v1283
    %v1511 = vadd.f32 %v1191, %v1287
    %v1512 = vadd.f32 %v1192, %v1291
    %v1513 = vadd.f32 %v1193, %v1295
    %v1514 = vadd.f32 %v1194, %v1299
    %v1515 = vadd.f32 %v1195, %v1303
    %v1516 = vadd.f32 %v1196, %v1307
    %v1517 = vadd.f32 %v1197, %v1311
    %v1518 = vadd.f32 %v1198, %v1315
    %v1519 = vadd.f32 %v1199, %v1319
    %v1520 = vadd.f32 %v1200, %v1323
    %v1521 = vadd.f32 %v1201, %v1327
    %v1522 = vadd.f32 %v1202, %v1331
    %v1523 = vadd.f32 %v1203, %v1335
    %v1524 = vadd.f32 %v1204, %v1339
    %v1525 = vadd.f32 %v1205, %v1343
    %v1526 = vadd.f32 %v1206, %v1347
    %v1527 = vadd.f32 %v1207, %v1351
    %v1528 = vadd.f32 %v1208, %v1355
    %v1529 = vadd.f32 %v1209, %v1359
    %v1530 = vadd.f32 %v1210, %v1363
    %v1531 = vadd.f32 %v1211, %v1367
    %v1532 = vadd.f32 %v1212, %v1371
    %v1533 = vadd.f32 %v1213, %v1375
    %v1534 = vadd.f32 %v1214, %v1379
    %v1535 = vadd.f32 %v1215, %v1383
    %v1536 = vadd.f32 %v1216, %v1387
    %v1537 = vadd.f32 %v1217, %v1391
    %v1538 = vadd.f32 %v1218, %v1395
    %v1539 = vadd.f32 %v1219, %v1399
    %v1540 = vadd.f32 %v1220, %v1403
    %v1541 = vadd.f32 %v1221, %v1407
    %v1542 = vadd.f32 %v1222, %v1411
    %v1543 = vadd.f32 %v1223, %v1415
    %v1544 = vadd.f32 %v1224, %v1419
    %v1545 = vadd.f32 %v1225, %v1423
    %v1546 = vadd.f32 %v1226, %v1427
    %v1547 = vadd.f32 %v1227, %v1431
    %v1548 = vadd.f32 %v1228, %v1435
    %v1549 = vadd.f32 %v1229, %v1439
    %v1550 = vadd.f32 %v1230, %v1443
    %v1551 = vadd.f32 %v1231, %v1447
    %v1552 = vadd.f32 %v1232, %v1451
    %v1553 = vadd.f32 %v1233, %v1455
    %v1554 = vadd.f32 %v1234, %v1459
    %v1555 = vadd.f32 %v1235, %v1463
    %v1556 = vadd.f32 %v1236, %v1467
    %v1557 = vadd.f32 %v1237, %v1471
    %v1558 = vadd.f32 %v1238, %v1475
    %v1559 = vadd.f32 %v1239, %v1479
    %v1560 = vadd.f32 %v1240, %v1483
    %v1561 = vadd.f32 %v1241, %v1487
    %v1562 = vadd.f32 %v1242, %v1491
    %v1563 = vadd.f32 %v1243, %v1495
    %v1564 = vadd.f32 %v1244, %v1499
    %v1565 = vmax.f32 %v1501, 0.0
    %v1566 = vmax.f32 %v1502, 0.0
    %v1567 = vmax.f32 %v1503, 0.0
    %v1568 = vmax.f32 %v1504, 0.0
    %v1569 = vmax.f32 %v1505, 0.0
    %v1570 = vmax.f32 %v1506, 0.0
    %v1571 = vmax.f32 %v1507, 0.0
    %v1572 = vmax.f32 %v1508, 0.0
    %v1573 = vmax.f32 %v1509, 0.0
    %v1574 = vmax.f32 %v1510, 0.0
    %v1575 = vmax.f32 %v1511, 0.0
    %v1576 = vmax.f32 %v1512, 0.0
    %v1577 = vmax.f32 %v1513, 0.0
    %v1578 = vmax.f32 %v1514, 0.0
    %v1579 = vmax.f32 %v1515, 0.0
    %v1580 = vmax.f32 %v1516, 0.0
    %v1581 = vmax.f32 %v1517, 0.0
    %v1582 = vmax.f32 %v1518, 0.0
    %v1583 = vmax.f32 %v1519, 0.0
    %v1584 = vmax.f32 %v1520, 0.0
    %v1585 = vmax.f32 %v1521, 0.0
    %v1586 = vmax.f32 %v1522, 0.0
    %v1587 = vmax.f32 %v1523, 0.0
    %v1588 = vmax.f32 %v1524, 0.0
    %v1589 = vmax.f32 %v1525, 0.0
    %v1590 = vmax.f32 %v1526, 0.0
    %v1591 = vmax.f32 %v1527, 0.0
    %v1592 = vmax.f32 %v1528, 0.0
    %v1593 = vmax.f32 %v1529, 0.0
    %v1594 = vmax.f32 %v1530, 0.0
    %v1595 = vmax.f32 %v1531, 0.0
    %v1596 = vmax.f32 %v1532, 0.0
    %v1597 = vmax.f32 %v1533, 0.0
    %v1598 = vmax.f32 %v1534, 0.0
    %v1599 = vmax.f32 %v1535, 0.0
    %v1600 = vmax.f32 %v1536, 0.0
    %v1601 = vmax.f32 %v1537, 0.0
    %v1602 = vmax.f32 %v1538, 0.0
    %v1603 = vmax.f32 %v1539, 0.0
    %v1604 = vmax.f32 %v1540, 0.0
    %v1605 = vmax.f32 %v1541, 0.0
    %v1606 = vmax.f32 %v1542, 0.0
    %v1607 = vmax.f32 %v1543, 0.0
    %v1608 = vmax.f32 %v1544, 0.0
    %v1609 = vmax.f32 %v1545, 0.0
    %v1610 = vmax.f32 %v1546, 0.0
    %v1611 = vmax.f32 %v1547, 0.0
    %v1612 = vmax.f32 %v1548, 0.0
    %v1613 = vmax.f32 %v1549, 0.0
    %v1614 = vmax.f32 %v1550, 0.0
    %v1615 = vmax.f32 %v1551, 0.0
    %v1616 = vmax.f32 %v1552, 0.0
    %v1617 = vmax.f32 %v1553, 0.0
    %v1618 = vmax.f32 %v1554, 0.0
    %v1619 = vmax.f32 %v1555, 0.0
    %v1620 = vmax.f32 %v1556, 0.0
    %v1621 = vmax.f32 %v1557, 0.0
    %v1622 = vmax.f32 %v1558, 0.0
    %v1623 = vmax.f32 %v1559, 0.0
    %v1624 = vmax.f32 %v1560, 0.0
    %v1625 = vmax.f32 %v1561, 0.0
    %v1626 = vmax.f32 %v1562, 0.0
    %v1627 = vmax.f32 %v1563, 0.0
    %v1628 = vmax.f32 %v1564, 0.0
    %1629 = vset.pattern.permute.xlu0 4
    %1630 = vperm.xlu0 %1629, %v17
    %v1631 = vpop.permute.xlu0 %1630
    %1633 = vset.pattern.permute.xlu0 4
    %1634 = vperm.xlu0 %1633, %v18
    %v1635 = vpop.permute.xlu0 %1634
    %1637 = vset.pattern.permute.xlu0 4
    %1638 = vperm.xlu0 %1637, %v19
    %v1639 = vpop.permute.xlu0 %1638
    %1641 = vset.pattern.permute.xlu0 4
    %1642 = vperm.xlu0 %1641, %v20
    %v1643 = vpop.permute.xlu0 %1642
    %1645 = vset.pattern.permute.xlu0 4
    %1646 = vperm.xlu0 %1645, %v21
    %v1647 = vpop.permute.xlu0 %1646
    %1649 = vset.pattern.permute.xlu0 4
    %1650 = vperm.xlu0 %1649, %v22
    %v1651 = vpop.permute.xlu0 %1650
    %1653 = vset.pattern.permute.xlu0 4
    %1654 = vperm.xlu0 %1653, %v23
    %v1655 = vpop.permute.xlu0 %1654
    %1657 = vset.pattern.permute.xlu0 4
    %1658 = vperm.xlu0 %1657, %v24
    %v1659 = vpop.permute.xlu0 %1658
    %1661 = vset.pattern.permute.xlu0 4
    %1662 = vperm.xlu0 %1661, %v25
    %v1663 = vpop.permute.xlu0 %1662
    %1665 = vset.pattern.permute.xlu0 4
    %1666 = vperm.xlu0 %1665, %v26
    %v1667 = vpop.permute.xlu0 %1666
    %1669 = vset.pattern.permute.xlu0 4
    %1670 = vperm.xlu0 %1669, %v27
    %v1671 = vpop.permute.xlu0 %1670
    %1673 = vset.pattern.permute.xlu0 4
    %1674 = vperm.xlu0 %1673, %v28
    %v1675 = vpop.permute.xlu0 %1674
    %1677 = vset.pattern.permute.xlu0 4
    %1678 = vperm.xlu0 %1677, %v29
    %v1679 = vpop.permute.xlu0 %1678
    %1681 = vset.pattern.permute.xlu0 4
    %1682 = vperm.xlu0 %1681, %v30
    %v1683 = vpop.permute.xlu0 %1682
    %1685 = vset.pattern.permute.xlu0 4
    %1686 = vperm.xlu0 %1685, %v31
    %v1687 = vpop.permute.xlu0 %1686
    %1689 = vset.pattern.permute.xlu0 4
    %1690 = vperm.xlu0 %1689, %v32
    %v1691 = vpop.permute.xlu0 %1690
    %1693 = vset.pattern.permute.xlu0 4
    %1694 = vperm.xlu0 %1693, %v33
    %v1695 = vpop.permute.xlu0 %1694
    %1697 = vset.pattern.permute.xlu0 4
    %1698 = vperm.xlu0 %1697, %v34
    %v1699 = vpop.permute.xlu0 %1698
    %1701 = vset.pattern.permute.xlu0 4
    %1702 = vperm.xlu0 %1701, %v35
    %v1703 = vpop.permute.xlu0 %1702
    %1705 = vset.pattern.permute.xlu0 4
    %1706 = vperm.xlu0 %1705, %v36
    %v1707 = vpop.permute.xlu0 %1706
    %1709 = vset.pattern.permute.xlu0 4
    %1710 = vperm.xlu0 %1709, %v37
    %v1711 = vpop.permute.xlu0 %1710
    %1713 = vset.pattern.permute.xlu0 4
    %1714 = vperm.xlu0 %1713, %v38
    %v1715 = vpop.permute.xlu0 %1714
    %1717 = vset.pattern.permute.xlu0 4
    %1718 = vperm.xlu0 %1717, %v39
    %v1719 = vpop.permute.xlu0 %1718
    %1721 = vset.pattern.permute.xlu0 4
    %1722 = vperm.xlu0 %1721, %v40
    %v1723 = vpop.permute.xlu0 %1722
    %1725 = vset.pattern.permute.xlu0 4
    %1726 = vperm.xlu0 %1725, %v41
    %v1727 = vpop.permute.xlu0 %1726
    %1729 = vset.pattern.permute.xlu0 4
    %1730 = vperm.xlu0 %1729, %v42
    %v1731 = vpop.permute.xlu0 %1730
    %1733 = vset.pattern.permute.xlu0 4
    %1734 = vperm.xlu0 %1733, %v43
    %v1735 = vpop.permute.xlu0 %1734
    %1737 = vset.pattern.permute.xlu0 4
    %1738 = vperm.xlu0 %1737, %v44
    %v1739 = vpop.permute.xlu0 %1738
    %1741 = vset.pattern.permute.xlu0 4
    %1742 = vperm.xlu0 %1741, %v45
    %v1743 = vpop.permute.xlu0 %1742
    %1745 = vset.pattern.permute.xlu0 4
    %1746 = vperm.xlu0 %1745, %v46
    %v1747 = vpop.permute.xlu0 %1746
    %1749 = vset.pattern.permute.xlu0 4
    %1750 = vperm.xlu0 %1749, %v47
    %v1751 = vpop.permute.xlu0 %1750
    %1753 = vset.pattern.permute.xlu0 4
    %1754 = vperm.xlu0 %1753, %v48
    %v1755 = vpop.permute.xlu0 %1754
    %1757 = vset.pattern.permute.xlu0 4
    %1758 = vperm.xlu0 %1757, %v49
    %v1759 = vpop.permute.xlu0 %1758
    %1761 = vset.pattern.permute.xlu0 4
    %1762 = vperm.xlu0 %1761, %v50
    %v1763 = vpop.permute.xlu0 %1762
    %1765 = vset.pattern.permute.xlu0 4
    %1766 = vperm.xlu0 %1765, %v51
    %v1767 = vpop.permute.xlu0 %1766
    %1769 = vset.pattern.permute.xlu0 4
    %1770 = vperm.xlu0 %1769, %v52
    %v1771 = vpop.permute.xlu0 %1770
    %1773 = vset.pattern.permute.xlu0 4
    %1774 = vperm.xlu0 %1773, %v53
    %v1775 = vpop.permute.xlu0 %1774
    %1777 = vset.pattern.permute.xlu0 4
    %1778 = vperm.xlu0 %1777, %v54
    %v1779 = vpop.permute.xlu0 %1778
    %1781 = vset.pattern.permute.xlu0 4
    %1782 = vperm.xlu0 %1781, %v55
    %v1783 = vpop.permute.xlu0 %1782
    %1785 = vset.pattern.permute.xlu0 4
    %1786 = vperm.xlu0 %1785, %v56
    %v1787 = vpop.permute.xlu0 %1786
    %1789 = vset.pattern.permute.xlu0 4
    %1790 = vperm.xlu0 %1789, %v57
    %v1791 = vpop.permute.xlu0 %1790
    %1793 = vset.pattern.permute.xlu0 4
    %1794 = vperm.xlu0 %1793, %v58
    %v1795 = vpop.permute.xlu0 %1794
    %1797 = vset.pattern.permute.xlu0 4
    %1798 = vperm.xlu0 %1797, %v59
    %v1799 = vpop.permute.xlu0 %1798
    %1801 = vset.pattern.permute.xlu0 4
    %1802 = vperm.xlu0 %1801, %v60
    %v1803 = vpop.permute.xlu0 %1802
    %1805 = vset.pattern.permute.xlu0 4
    %1806 = vperm.xlu0 %1805, %v61
    %v1807 = vpop.permute.xlu0 %1806
    %1809 = vset.pattern.permute.xlu0 4
    %1810 = vperm.xlu0 %1809, %v62
    %v1811 = vpop.permute.xlu0 %1810
    %1813 = vset.pattern.permute.xlu0 4
    %1814 = vperm.xlu0 %1813, %v63
    %v1815 = vpop.permute.xlu0 %1814
    %1817 = vset.pattern.permute.xlu0 4
    %1818 = vperm.xlu0 %1817, %v64
    %v1819 = vpop.permute.xlu0 %1818
    %1821 = vset.pattern.permute.xlu0 4
    %1822 = vperm.xlu0 %1821, %v65
    %v1823 = vpop.permute.xlu0 %1822
    %1825 = vset.pattern.permute.xlu0 4
    %1826 = vperm.xlu0 %1825, %v66
    %v1827 = vpop.permute.xlu0 %1826
    %1829 = vset.pattern.permute.xlu0 4
    %1830 = vperm.xlu0 %1829, %v67
    %v1831 = vpop.permute.xlu0 %1830
    %1833 = vset.pattern.permute.xlu0 4
    %1834 = vperm.xlu0 %1833, %v68
    %v1835 = vpop.permute.xlu0 %1834
    %1837 = vset.pattern.permute.xlu0 4
    %1838 = vperm.xlu0 %1837, %v69
    %v1839 = vpop.permute.xlu0 %1838
    %1841 = vset.pattern.permute.xlu0 4
    %1842 = vperm.xlu0 %1841, %v70
    %v1843 = vpop.permute.xlu0 %1842
    %1845 = vset.pattern.permute.xlu0 4
    %1846 = vperm.xlu0 %1845, %v71
    %v1847 = vpop.permute.xlu0 %1846
    %1849 = vset.pattern.permute.xlu0 4
    %1850 = vperm.xlu0 %1849, %v72
    %v1851 = vpop.permute.xlu0 %1850
    %1853 = vset.pattern.permute.xlu0 4
    %1854 = vperm.xlu0 %1853, %v73
    %v1855 = vpop.permute.xlu0 %1854
    %1857 = vset.pattern.permute.xlu0 4
    %1858 = vperm.xlu0 %1857, %v74
    %v1859 = vpop.permute.xlu0 %1858
    %1861 = vset.pattern.permute.xlu0 4
    %1862 = vperm.xlu0 %1861, %v75
    %v1863 = vpop.permute.xlu0 %1862
    %1865 = vset.pattern.permute.xlu0 4
    %1866 = vperm.xlu0 %1865, %v76
    %v1867 = vpop.permute.xlu0 %1866
    %1869 = vset.pattern.permute.xlu0 4
    %1870 = vperm.xlu0 %1869, %v77
    %v1871 = vpop.permute.xlu0 %1870
    %1873 = vset.pattern.permute.xlu0 4
    %1874 = vperm.xlu0 %1873, %v78
    %v1875 = vpop.permute.xlu0 %1874
    %1877 = vset.pattern.permute.xlu0 4
    %1878 = vperm.xlu0 %1877, %v79
    %v1879 = vpop.permute.xlu0 %1878
    %1881 = vset.pattern.permute.xlu0 4
    %1882 = vperm.xlu0 %1881, %v80
    %v1883 = vpop.permute.xlu0 %1882
    %v1885 = vmul.f32 %v1565, %v1631
    %v1886 = vmul.f32 %v1566, %v1635
    %v1887 = vmul.f32 %v1567, %v1639
    %v1888 = vmul.f32 %v1568, %v1643
    %v1889 = vmul.f32 %v1569, %v1647
    %v1890 = vmul.f32 %v1570, %v1651
    %v1891 = vmul.f32 %v1571, %v1655
    %v1892 = vmul.f32 %v1572, %v1659
    %v1893 = vmul.f32 %v1573, %v1663
    %v1894 = vmul.f32 %v1574, %v1667
    %v1895 = vmul.f32 %v1575, %v1671
    %v1896 = vmul.f32 %v1576, %v1675
    %v1897 = vmul.f32 %v1577, %v1679
    %v1898 = vmul.f32 %v1578, %v1683
    %v1899 = vmul.f32 %v1579, %v1687
    %v1900 = vmul.f32 %v1580, %v1691
    %v1901 = vmul.f32 %v1581, %v1695
    %v1902 = vmul.f32 %v1582, %v1699
    %v1903 = vmul.f32 %v1583, %v1703
    %v1904 = vmul.f32 %v1584, %v1707
    %v1905 = vmul.f32 %v1585, %v1711
    %v1906 = vmul.f32 %v1586, %v1715
    %v1907 = vmul.f32 %v1587, %v1719
    %v1908 = vmul.f32 %v1588, %v1723
    %v1909 = vmul.f32 %v1589, %v1727
    %v1910 = vmul.f32 %v1590, %v1731
    %v1911 = vmul.f32 %v1591, %v1735
    %v1912 = vmul.f32 %v1592, %v1739
    %v1913 = vmul.f32 %v1593, %v1743
    %v1914 = vmul.f32 %v1594, %v1747
    %v1915 = vmul.f32 %v1595, %v1751
    %v1916 = vmul.f32 %v1596, %v1755
    %v1917 = vmul.f32 %v1597, %v1759
    %v1918 = vmul.f32 %v1598, %v1763
    %v1919 = vmul.f32 %v1599, %v1767
    %v1920 = vmul.f32 %v1600, %v1771
    %v1921 = vmul.f32 %v1601, %v1775
    %v1922 = vmul.f32 %v1602, %v1779
    %v1923 = vmul.f32 %v1603, %v1783
    %v1924 = vmul.f32 %v1604, %v1787
    %v1925 = vmul.f32 %v1605, %v1791
    %v1926 = vmul.f32 %v1606, %v1795
    %v1927 = vmul.f32 %v1607, %v1799
    %v1928 = vmul.f32 %v1608, %v1803
    %v1929 = vmul.f32 %v1609, %v1807
    %v1930 = vmul.f32 %v1610, %v1811
    %v1931 = vmul.f32 %v1611, %v1815
    %v1932 = vmul.f32 %v1612, %v1819
    %v1933 = vmul.f32 %v1613, %v1823
    %v1934 = vmul.f32 %v1614, %v1827
    %v1935 = vmul.f32 %v1615, %v1831
    %v1936 = vmul.f32 %v1616, %v1835
    %v1937 = vmul.f32 %v1617, %v1839
    %v1938 = vmul.f32 %v1618, %v1843
    %v1939 = vmul.f32 %v1619, %v1847
    %v1940 = vmul.f32 %v1620, %v1851
    %v1941 = vmul.f32 %v1621, %v1855
    %v1942 = vmul.f32 %v1622, %v1859
    %v1943 = vmul.f32 %v1623, %v1863
    %v1944 = vmul.f32 %v1624, %v1867
    %v1945 = vmul.f32 %v1625, %v1871
    %v1946 = vmul.f32 %v1626, %v1875
    %v1947 = vmul.f32 %v1627, %v1879
    %v1948 = vmul.f32 %v1628, %v1883
    %vm1949 = vcmask 64512
    %v1950 = vsel %vm1949, %v1885, 0.0
    %v1951 = vsel %vm1949, %v1886, 0.0
    %v1952 = vadd.f32 %v1950, %v1951
    %v1953 = vsel %vm1949, %v1887, 0.0
    %v1954 = vadd.f32 %v1952, %v1953
    %v1955 = vsel %vm1949, %v1888, 0.0
    %v1956 = vadd.f32 %v1954, %v1955
    %v1957 = vsel %vm1949, %v1889, 0.0
    %v1958 = vadd.f32 %v1956, %v1957
    %v1959 = vsel %vm1949, %v1890, 0.0
    %v1960 = vadd.f32 %v1958, %v1959
    %v1961 = vsel %vm1949, %v1891, 0.0
    %v1962 = vadd.f32 %v1960, %v1961
    %v1963 = vsel %vm1949, %v1892, 0.0
    %v1964 = vadd.f32 %v1962, %v1963
    %v1965 = vsel %vm1949, %v1893, 0.0
    %v1966 = vadd.f32 %v1964, %v1965
    %v1967 = vsel %vm1949, %v1894, 0.0
    %v1968 = vadd.f32 %v1966, %v1967
    %v1969 = vsel %vm1949, %v1895, 0.0
    %v1970 = vadd.f32 %v1968, %v1969
    %v1971 = vsel %vm1949, %v1896, 0.0
    %v1972 = vadd.f32 %v1970, %v1971
    %v1973 = vsel %vm1949, %v1897, 0.0
    %v1974 = vadd.f32 %v1972, %v1973
    %v1975 = vsel %vm1949, %v1898, 0.0
    %v1976 = vadd.f32 %v1974, %v1975
    %v1977 = vsel %vm1949, %v1899, 0.0
    %v1978 = vadd.f32 %v1976, %v1977
    %v1979 = vsel %vm1949, %v1900, 0.0
    %v1980 = vadd.f32 %v1978, %v1979
    %v1981 = vsel %vm1949, %v1901, 0.0
    %v1982 = vadd.f32 %v1980, %v1981
    %v1983 = vsel %vm1949, %v1902, 0.0
    %v1984 = vadd.f32 %v1982, %v1983
    %v1985 = vsel %vm1949, %v1903, 0.0
    %v1986 = vadd.f32 %v1984, %v1985
    %v1987 = vsel %vm1949, %v1904, 0.0
    %v1988 = vadd.f32 %v1986, %v1987
    %v1989 = vsel %vm1949, %v1905, 0.0
    %v1990 = vadd.f32 %v1988, %v1989
    %v1991 = vsel %vm1949, %v1906, 0.0
    %v1992 = vadd.f32 %v1990, %v1991
    %v1993 = vsel %vm1949, %v1907, 0.0
    %v1994 = vadd.f32 %v1992, %v1993
    %v1995 = vsel %vm1949, %v1908, 0.0
    %v1996 = vadd.f32 %v1994, %v1995
    %v1997 = vsel %vm1949, %v1909, 0.0
    %v1998 = vadd.f32 %v1996, %v1997
    %v1999 = vsel %vm1949, %v1910, 0.0
    %v2000 = vadd.f32 %v1998, %v1999
    %v2001 = vsel %vm1949, %v1911, 0.0
    %v2002 = vadd.f32 %v2000, %v2001
    %v2003 = vsel %vm1949, %v1912, 0.0
    %v2004 = vadd.f32 %v2002, %v2003
    %v2005 = vsel %vm1949, %v1913, 0.0
    %v2006 = vadd.f32 %v2004, %v2005
    %v2007 = vsel %vm1949, %v1914, 0.0
    %v2008 = vadd.f32 %v2006, %v2007
    %v2009 = vsel %vm1949, %v1915, 0.0
    %v2010 = vadd.f32 %v2008, %v2009
    %v2011 = vsel %vm1949, %v1916, 0.0
    %v2012 = vadd.f32 %v2010, %v2011
    %v2013 = vsel %vm1949, %v1917, 0.0
    %v2014 = vadd.f32 %v2012, %v2013
    %v2015 = vsel %vm1949, %v1918, 0.0
    %v2016 = vadd.f32 %v2014, %v2015
    %v2017 = vsel %vm1949, %v1919, 0.0
    %v2018 = vadd.f32 %v2016, %v2017
    %v2019 = vsel %vm1949, %v1920, 0.0
    %v2020 = vadd.f32 %v2018, %v2019
    %v2021 = vsel %vm1949, %v1921, 0.0
    %v2022 = vadd.f32 %v2020, %v2021
    %v2023 = vsel %vm1949, %v1922, 0.0
    %v2024 = vadd.f32 %v2022, %v2023
    %v2025 = vsel %vm1949, %v1923, 0.0
    %v2026 = vadd.f32 %v2024, %v2025
    %v2027 = vsel %vm1949, %v1924, 0.0
    %v2028 = vadd.f32 %v2026, %v2027
    %v2029 = vsel %vm1949, %v1925, 0.0
    %v2030 = vadd.f32 %v2028, %v2029
    %v2031 = vsel %vm1949, %v1926, 0.0
    %v2032 = vadd.f32 %v2030, %v2031
    %v2033 = vsel %vm1949, %v1927, 0.0
    %v2034 = vadd.f32 %v2032, %v2033
    %v2035 = vsel %vm1949, %v1928, 0.0
    %v2036 = vadd.f32 %v2034, %v2035
    %v2037 = vsel %vm1949, %v1929, 0.0
    %v2038 = vadd.f32 %v2036, %v2037
    %v2039 = vsel %vm1949, %v1930, 0.0
    %v2040 = vadd.f32 %v2038, %v2039
    %v2041 = vsel %vm1949, %v1931, 0.0
    %v2042 = vadd.f32 %v2040, %v2041
    %v2043 = vsel %vm1949, %v1932, 0.0
    %v2044 = vadd.f32 %v2042, %v2043
    %v2045 = vsel %vm1949, %v1933, 0.0
    %v2046 = vadd.f32 %v2044, %v2045
    %v2047 = vsel %vm1949, %v1934, 0.0
    %v2048 = vadd.f32 %v2046, %v2047
    %v2049 = vsel %vm1949, %v1935, 0.0
    %v2050 = vadd.f32 %v2048, %v2049
    %v2051 = vsel %vm1949, %v1936, 0.0
    %v2052 = vadd.f32 %v2050, %v2051
    %v2053 = vsel %vm1949, %v1937, 0.0
    %v2054 = vadd.f32 %v2052, %v2053
    %v2055 = vsel %vm1949, %v1938, 0.0
    %v2056 = vadd.f32 %v2054, %v2055
    %v2057 = vsel %vm1949, %v1939, 0.0
    %v2058 = vadd.f32 %v2056, %v2057
    %v2059 = vsel %vm1949, %v1940, 0.0
    %v2060 = vadd.f32 %v2058, %v2059
    %v2061 = vsel %vm1949, %v1941, 0.0
    %v2062 = vadd.f32 %v2060, %v2061
    %v2063 = vsel %vm1949, %v1942, 0.0
    %v2064 = vadd.f32 %v2062, %v2063
    %v2065 = vsel %vm1949, %v1943, 0.0
    %v2066 = vadd.f32 %v2064, %v2065
    %v2067 = vsel %vm1949, %v1944, 0.0
    %v2068 = vadd.f32 %v2066, %v2067
    %v2069 = vsel %vm1949, %v1945, 0.0
    %v2070 = vadd.f32 %v2068, %v2069
    %v2071 = vsel %vm1949, %v1946, 0.0
    %v2072 = vadd.f32 %v2070, %v2071
    %v2073 = vsel %vm1949, %v1947, 0.0
    %v2074 = vadd.f32 %v2072, %v2073
    %v2075 = vsel %vm1949, %v1948, 0.0
    %v2076 = vadd.f32 %v2074, %v2075
    %v2077 = vrot.slane %v2076, 4
    %v2078 = vadd.f32 %v2076, %v2077
    %v2079 = vrot.slane %v2078, 2
    %v2080 = vadd.f32 %v2078, %v2079
    %v2081 = vrot.slane %v2080, 1
    %v2082 = vadd.f32 %v2080, %v2081
    %s2083 = sld [smem:[#allocation2]]
    %v2084 = vstv %s2083
    %v2085 = vadd.f32 %v2082, %v2084
    %vm2086 = vcmask 57344
    %2087 = vst.msk [vmem:[#allocation3] sm:$0x1] %vm2086, %v2085
    // Predicated region
    $region14: #{tpu_custom_call.1} parent=1 // pred_check
      _
    $region15: #{tpu_custom_call.1} parent=1 // pred_check_branch
      %2089 = sbr.rel (0) target = $region17
    $region16: #{tpu_custom_call.1} parent=1 // pred_region
      %s2091 = ssub.s32 16, 16
      %2092 = vsyncadd [#allocation4], %s2091
      %s2094 = sshll.u32 [#allocation3], 4
      %s2095 = int_to_ptr.vmem [resolvable:$true] %s2094
      %2097 = dma.vmem_to_hbm [thread:$0]  %s2095, 16, %s3, [#allocation4]
    $region17: #{tpu_custom_call.1} parent=1 // pred_fallthru
      _
    // Predicated region
    $region18: #{tpu_custom_call.1} parent=1 // pred_check
      _
    $region19: #{tpu_custom_call.1} parent=1 // pred_check_branch
      %2099 = sbr.rel (0) target = $region21
    $region20: #{tpu_custom_call.1} parent=1 // pred_region
      %2100 = dma.done [#allocation4], 16
    $region21: #{tpu_custom_call.1} parent=1 // pred_fallthru
      _
    %2101 = vsyncpa [#allocation4], 1

</llo_original>
